<compile_context>
chip_gen: v7x
topology: tpu7x:2x2x1
jax: 0.10.0
libtpu: 0.0.40
codegen_flags: <defaults>
</compile_context>

<pallas_src>
import jax
import jax.numpy as jnp
from jax.experimental import pallas as pl
from jax.experimental.pallas import tpu as pltpu

HIDDEN = 768
NUM_CLASSES = 210
LANE = 128
SUBLANE = 8


def _round_up(x, m):
    return ((x + m - 1) // m) * m


def _head_kernel(x_ref, w1_ref, b1_ref, w2_ref, b2_ref, o_ref):
    # x_ref: [TB, H] bf16 pooled CLS activations. Weights bf16, biases f32.
    h = jnp.dot(x_ref[...], w1_ref[...], preferred_element_type=jnp.float32)
    h = jnp.maximum(h + b1_ref[...], 0.0)                          # pre_classifier + ReLU
    out = jnp.dot(h.astype(w2_ref.dtype), w2_ref[...],
                  preferred_element_type=jnp.float32)              # classifier
    o_ref[...] = (out + b2_ref[...]).astype(o_ref.dtype)


def _head_dropout_kernel(x_ref, w1_ref, b1_ref, mask_ref, w2_ref, b2_ref, o_ref):
    h = jnp.dot(x_ref[...], w1_ref[...], preferred_element_type=jnp.float32)
    h = jnp.maximum(h + b1_ref[...], 0.0)                          # pre_classifier + ReLU
    h = h * mask_ref[...]                                          # dropout (0 or 1/(1-p))
    out = jnp.dot(h.astype(w2_ref.dtype), w2_ref[...],
                  preferred_element_type=jnp.float32)              # classifier
    o_ref[...] = (out + b2_ref[...]).astype(o_ref.dtype)


def dropout_mask(key, drop_p, shape):
    """Training-mode dropout mask: 0 with prob p, else 1/(1-p)."""
    keep = jax.random.bernoulli(key, 1.0 - drop_p, shape)
    return keep.astype(jnp.float32) / (1.0 - drop_p)


def lm_class_head(hidden_state, w1, b1, w2, b2, *, drop_p=0.0, rng_key=None, batch_tile=256):
    """hidden_state: [B, S, 768]. Returns logits [B, 210] f32."""
    B, S, H = hidden_state.shape
    assert H == HIDDEN
    C = w2.shape[1]

    # CLS pooling outside the kernel: only [B, H] activations are DMA'd into VMEM.
    pooled = hidden_state[:, 0, :].astype(jnp.bfloat16)

    # bf16 weights (full-rate MXU, half the weight DMA); biases kept in f32.
    w1b = w1.astype(jnp.bfloat16)
    w2b = w2.astype(jnp.bfloat16)
    b1f = b1.astype(jnp.float32).reshape(1, H)
    b2f = b2.astype(jnp.float32).reshape(1, C)

    # Pad classifier columns 210 -> 256 for lane-dense (unmasked) output stores.
    Cp = _round_up(C, LANE)
    if Cp != C:
        w2b = jnp.pad(w2b, ((0, 0), (0, Cp - C)))
        b2f = jnp.pad(b2f, ((0, 0), (0, Cp - C)))

    # Batch tiling: large tiles to fill the MXU; prefer >= 2 grid steps when the batch
    # allows so both v7x TensorCores get work. Pad B up to a multiple of the tile.
    bt = min(batch_tile, _round_up(B, SUBLANE))
    while bt > SUBLANE and _round_up(B, bt) // bt < 2:
        bt //= 2
    bt = max(_round_up(bt, SUBLANE), SUBLANE)
    Bp = _round_up(B, bt)
    if Bp != B:
        pooled = jnp.pad(pooled, ((0, Bp - B), (0, 0)))

    use_dropout = drop_p > 0.0
    if use_dropout:
        if rng_key is None:
            rng_key = jax.random.PRNGKey(0)
        mask = dropout_mask(rng_key, float(drop_p), (B, H))
        if Bp != B:
            mask = jnp.pad(mask, ((0, Bp - B), (0, 0)))

    grid = (Bp // bt,)
    x_spec = pl.BlockSpec((bt, H), lambda i: (i, 0))
    w1_spec = pl.BlockSpec((H, H), lambda i: (0, 0))    # resident: constant block index
    b1_spec = pl.BlockSpec((1, H), lambda i: (0, 0))
    w2_spec = pl.BlockSpec((H, Cp), lambda i: (0, 0))
    b2_spec = pl.BlockSpec((1, Cp), lambda i: (0, 0))
    out_spec = pl.BlockSpec((bt, Cp), lambda i: (i, 0))
    out_shape = jax.ShapeDtypeStruct((Bp, Cp), jnp.float32)
    params = pltpu.CompilerParams(dimension_semantics=("parallel",))

    if use_dropout:
        mask_spec = pl.BlockSpec((bt, H), lambda i: (i, 0))
        out = pl.pallas_call(
            _head_dropout_kernel,
            out_shape=out_shape,
            grid=grid,
            in_specs=[x_spec, w1_spec, b1_spec, mask_spec, w2_spec, b2_spec],
            out_specs=out_spec,
            compiler_params=params,
        )(pooled, w1b, b1f, mask, w2b, b2f)
    else:
        out = pl.pallas_call(
            _head_kernel,
            out_shape=out_shape,
            grid=grid,
            in_specs=[x_spec, w1_spec, b1_spec, w2_spec, b2_spec],
            out_specs=out_spec,
            compiler_params=params,
        )(pooled, w1b, b1f, w2b, b2f)

    return out[:B, :C]


def _init_linear(key, fan_in, fan_out):
    # Matches torch.nn.Linear default init: U(-1/sqrt(fan_in), 1/sqrt(fan_in)).
    kw, kb = jax.random.split(key)
    bound = 1.0 / jnp.sqrt(fan_in)
    # stored as [in, out] so the kernel computes x @ W + b
    w = jax.random.uniform(kw, (fan_in, fan_out), jnp.float32, -bound, bound)
    b = jax.random.uniform(kb, (1, fan_out), jnp.float32, -bound, bound)
    return w, b


if __name__ == "__main__":
    key = jax.random.PRNGKey(0)
    k_x, k_w1, k_w2 = jax.random.split(key, 3)

    B, S = 8, 8  # small shapes; hidden size is fixed at 768 by the module
    # stand-in for LMModel(input_ids, attention_mask)[0]
    hidden_state = jax.random.normal(k_x, (B, S, HIDDEN), jnp.float32)

    w1, b1 = _init_linear(k_w1, HIDDEN, HIDDEN)       # pre_classifier
    w2, b2 = _init_linear(k_w2, HIDDEN, NUM_CLASSES)  # classifier

    # --- eval mode (dropout = identity) ---
    out = lm_class_head(hidden_state, w1, b1, w2, b2, drop_p=0.0)
    out = jax.block_until_ready(out)
    assert out.shape == (B, NUM_CLASSES)

    # pure-JAX reference with matching bf16/f32 numerics
    pooled_bf = hidden_state[:, 0, :].astype(jnp.bfloat16)
    w1_bf = w1.astype(jnp.bfloat16)
    w2_bf = w2.astype(jnp.bfloat16)
    h_ref = jnp.maximum(
        jnp.dot(pooled_bf, w1_bf, preferred_element_type=jnp.float32) + b1, 0.0)
    ref = jnp.dot(h_ref.astype(jnp.bfloat16), w2_bf,
                  preferred_element_type=jnp.float32) + b2
    assert jnp.allclose(out, ref, atol=2e-2, rtol=2e-2), "eval-mode mismatch vs reference"

    # --- training mode (dropout active) ---
    drop_p = 0.1
    drop_key = jax.random.PRNGKey(42)
    out_drop = lm_class_head(hidden_state, w1, b1, w2, b2, drop_p=drop_p, rng_key=drop_key)
    out_drop = jax.block_until_ready(out_drop)
    assert out_drop.shape == (B, NUM_CLASSES)

    mask_ref = dropout_mask(drop_key, drop_p, (B, HIDDEN))
    hd_ref = h_ref * mask_ref
    ref_drop = jnp.dot(hd_ref.astype(jnp.bfloat16), w2_bf,
                       preferred_element_type=jnp.float32) + b2
    assert jnp.allclose(out_drop, ref_drop, atol=2e-2, rtol=2e-2), "dropout-mode mismatch vs reference"
    assert bool(jnp.all(jnp.isfinite(out_drop)))

    print("KERNEL_OK")
</pallas_src>

<mosaic_0001>
module attributes {stable_mosaic.version = 11 : i64} {
  func.func @_head_kernel(%arg0: i32, %arg1: memref<8x768xbf16, #tpu.memory_space<vmem>>, %arg2: memref<768x768xbf16, #tpu.memory_space<vmem>>, %arg3: memref<1x768xf32, #tpu.memory_space<vmem>>, %arg4: memref<768x256xbf16, #tpu.memory_space<vmem>>, %arg5: memref<1x256xf32, #tpu.memory_space<vmem>>, %arg6: memref<8x256xf32, #tpu.memory_space<vmem>>) attributes {dimension_semantics = [#tpu.dimension_semantics<parallel>], iteration_bounds = array<i64: 1>, scalar_prefetch = 0 : i64, scratch_operands = 0 : i64, tpu.core_type = #tpu.core_type<tc>, window_params = [{transform_indices = @transform_0, window_bounds = array<i64: 8, 768>}, {pipeline_mode = #tpu.pipeline_mode<synchronous>, transform_indices = @transform_1, window_bounds = array<i64: 768, 768>}, {pipeline_mode = #tpu.pipeline_mode<synchronous>, transform_indices = @transform_2, window_bounds = array<i64: 1, 768>}, {pipeline_mode = #tpu.pipeline_mode<synchronous>, transform_indices = @transform_3, window_bounds = array<i64: 768, 256>}, {pipeline_mode = #tpu.pipeline_mode<synchronous>, transform_indices = @transform_4, window_bounds = array<i64: 1, 256>}, {transform_indices = @transform_5, window_bounds = array<i64: 8, 256>}]} {
    %c0 = arith.constant 0 : index
    %c0_0 = arith.constant 0 : index
    %0 = vector.load %arg1[%c0, %c0_0] : memref<8x768xbf16, #tpu.memory_space<vmem>>, vector<8x768xbf16>
    %c0_1 = arith.constant 0 : index
    %c0_2 = arith.constant 0 : index
    %1 = vector.load %arg2[%c0_1, %c0_2] : memref<768x768xbf16, #tpu.memory_space<vmem>>, vector<768x768xbf16>
    %cst = arith.constant dense<0.000000e+00> : vector<8x768xf32>
    %2 = tpu.matmul %0, %1, %cst {dimension_numbers = #tpu.dot_dimension_numbers<[1], [0], [0], [1], [0, 0, 1, 1], [], []>} : vector<8x768xbf16>, vector<768x768xbf16>, vector<8x768xf32> -> vector<8x768xf32>
    %c0_3 = arith.constant 0 : index
    %c0_4 = arith.constant 0 : index
    %3 = vector.load %arg3[%c0_3, %c0_4] : memref<1x768xf32, #tpu.memory_space<vmem>>, vector<1x768xf32>
    %4 = vector.broadcast %3 : vector<1x768xf32> to vector<8x768xf32>
    %5 = arith.addf %2, %4 : vector<8x768xf32>
    %cst_5 = arith.constant 0.000000e+00 : f32
    %6 = vector.broadcast %cst_5 : f32 to vector<8x768xf32>
    %7 = arith.maximumf %5, %6 : vector<8x768xf32>
    %8 = arith.truncf %7 : vector<8x768xf32> to vector<8x768xbf16>
    %c0_6 = arith.constant 0 : index
    %c0_7 = arith.constant 0 : index
    %9 = vector.load %arg4[%c0_6, %c0_7] : memref<768x256xbf16, #tpu.memory_space<vmem>>, vector<768x256xbf16>
    %cst_8 = arith.constant dense<0.000000e+00> : vector<8x256xf32>
    %10 = tpu.matmul %8, %9, %cst_8 {dimension_numbers = #tpu.dot_dimension_numbers<[1], [0], [0], [1], [0, 0, 1, 1], [], []>} : vector<8x768xbf16>, vector<768x256xbf16>, vector<8x256xf32> -> vector<8x256xf32>
    %c0_9 = arith.constant 0 : index
    %c0_10 = arith.constant 0 : index
    %11 = vector.load %arg5[%c0_9, %c0_10] : memref<1x256xf32, #tpu.memory_space<vmem>>, vector<1x256xf32>
    %12 = vector.broadcast %11 : vector<1x256xf32> to vector<8x256xf32>
    %13 = arith.addf %10, %12 : vector<8x256xf32>
    %c0_11 = arith.constant 0 : index
    %c0_12 = arith.constant 0 : index
    %14 = vector.load %arg6[%c0_11, %c0_12] : memref<8x256xf32, #tpu.memory_space<vmem>>, vector<8x256xf32>
    tpu.vector_store %arg6[%c0_11, %c0_12], %13 {strides = array<i32>} : memref<8x256xf32, #tpu.memory_space<vmem>>, vector<8x256xf32>,
    return
  }
  func.func @transform_0(%arg0: i32) -> (i32, i32) {
    %c0_i32 = arith.constant 0 : i32
    %c0_i32_0 = arith.constant 0 : i32
    return %arg0, %c0_i32 : i32, i32
  }
  func.func @transform_1(%arg0: i32) -> (i32, i32) {
    %c0_i32 = arith.constant 0 : i32
    %c0_i32_0 = arith.constant 0 : i32
    %c0_i32_1 = arith.constant 0 : i32
    return %c0_i32, %c0_i32_0 : i32, i32
  }
  func.func @transform_2(%arg0: i32) -> (i32, i32) {
    %c0_i32 = arith.constant 0 : i32
    %c0_i32_0 = arith.constant 0 : i32
    %c0_i32_1 = arith.constant 0 : i32
    return %c0_i32, %c0_i32_0 : i32, i32
  }
  func.func @transform_3(%arg0: i32) -> (i32, i32) {
    %c0_i32 = arith.constant 0 : i32
    %c0_i32_0 = arith.constant 0 : i32
    %c0_i32_1 = arith.constant 0 : i32
    return %c0_i32, %c0_i32_0 : i32, i32
  }
  func.func @transform_4(%arg0: i32) -> (i32, i32) {
    %c0_i32 = arith.constant 0 : i32
    %c0_i32_0 = arith.constant 0 : i32
    %c0_i32_1 = arith.constant 0 : i32
    return %c0_i32, %c0_i32_0 : i32, i32
  }
  func.func @transform_5(%arg0: i32) -> (i32, i32) {
    %c0_i32 = arith.constant 0 : i32
    %c0_i32_0 = arith.constant 0 : i32
    return %arg0, %c0_i32 : i32, i32
  }
}

</mosaic_0001>

<llo_original>
// kernel: tpu_custom_call.1
$region0: #{tpu_custom_call.1}
  #allocation0 [shape = 'u32[]', space=smem, size = 0x4, offset = 0x4, fixed_abs, tag = 'smem constant byte address 0x4 - core index']
  #allocation1 [shape = 'u32[144,128]{1,0:T(1,128)}', space=vmem, size = 0x12000, scoped, tag = 'internal scratch']
  %s0 = inlined_call_operand.hbm [shape: bf16[8,768], index: 0, kind: input, shape index: {}]
  %s1 = inlined_call_operand.hbm [shape: bf16[768,768], index: 1, kind: input, shape index: {}]
  %s2 = inlined_call_operand.hbm [shape: f32[1,768], index: 2, kind: input, shape index: {}]
  %s3 = inlined_call_operand.hbm [shape: bf16[768,256], index: 3, kind: input, shape index: {}]
  %s4 = inlined_call_operand.hbm [shape: f32[1,256], index: 4, kind: input, shape index: {}]
  %s5 = inlined_call_operand.hbm [shape: f32[8,256], index: 5, kind: output, shape index: {}]
  %s6 = sld [smem:[#allocation0]]
  $region50: #{tpu_custom_call.1} parent=0
    _
  %s8 = ssub.s32 1, %s6
  %s9 = scalar_select 0, %s8, %s6
  $region1: #{tpu_custom_call.1} parent=0
    #allocation2 [shape = 'u8[12288]{0}', space=vmem, size = 0x3000, scoped, tag = 'input window, operand 0, single buffered']
    #allocation3 [shape = 's32[1]{0}', space=sflag, size = 0x4, scoped, tag = 'scoped memory for tpu_custom_call.1']
    #allocation4 [shape = 's32[1]{0}', space=sflag, size = 0x4, scoped, tag = 'scoped memory for tpu_custom_call.1']
    #allocation5 [shape = 'u8[1179648]{0}', space=vmem, size = 0x120000, scoped, tag = 'input window, operand 1, single buffered']
    #allocation6 [shape = 's32[1]{0}', space=sflag, size = 0x4, scoped, tag = 'scoped memory for tpu_custom_call.1']
    #allocation7 [shape = 'u8[3072]{0}', space=vmem, size = 0xc00, scoped, tag = 'input window, operand 2, single buffered']
    #allocation8 [shape = 'u8[393216]{0}', space=vmem, size = 0x60000, scoped, tag = 'input window, operand 3, single buffered']
    #allocation9 [shape = 's32[1]{0}', space=sflag, size = 0x4, scoped, tag = 'scoped memory for tpu_custom_call.1']
    #allocation10 [shape = 'u8[1024]{0}', space=vmem, size = 0x400, scoped, tag = 'input window, operand 4, single buffered']
    #allocation11 [shape = 'u8[8192]{0}', space=vmem, size = 0x2000, scoped, tag = 'output window, operand 0, single buffered']
    %10 = vsyncpa [#allocation3], 0
    %11 = vsyncpa [#allocation6], 0
    %12 = vsyncpa [#allocation9], 0
    %13 = vsyncpa [#allocation4], 0
    // Predicated region
    $region2: #{tpu_custom_call.1} parent=1 // pred_check
      _
    $region3: #{tpu_custom_call.1} parent=1 // pred_check_branch
      %15 = sbr.rel (0) target = $region5
    $region4: #{tpu_custom_call.1} parent=1 // pred_region
      %s17 = ssub.s32 384, 384
      %18 = vsyncadd [#allocation3], %s17
      %s20 = sshll.u32 [#allocation2], 4
      %s21 = int_to_ptr.vmem [resolvable:$true] %s20
      %23 = dma.hbm_to_vmem [thread:$0]  %s0, 384, %s21, [#allocation3]
    $region5: #{tpu_custom_call.1} parent=1 // pred_fallthru
      _
    // Predicated region
    $region6: #{tpu_custom_call.1} parent=1 // pred_check
      _
    $region7: #{tpu_custom_call.1} parent=1 // pred_check_branch
      %25 = sbr.rel (0) target = $region9
    $region8: #{tpu_custom_call.1} parent=1 // pred_region
      %s27 = ssub.s32 36864, 36864
      %28 = vsyncadd [#allocation6], %s27
      %s29 = sshll.u32 [#allocation5], 4
      %s30 = int_to_ptr.vmem [resolvable:$true] %s29
      %35 = dma.hbm_to_vmem [thread:$0]  %s1, 36864, %s30, [#allocation6], 384, 384, 24
    $region9: #{tpu_custom_call.1} parent=1 // pred_fallthru
      _
    // Predicated region
    $region10: #{tpu_custom_call.1} parent=1 // pred_check
      _
    $region11: #{tpu_custom_call.1} parent=1 // pred_check_branch
      %37 = sbr.rel (0) target = $region13
    $region12: #{tpu_custom_call.1} parent=1 // pred_region
      %s39 = ssub.s32 96, 96
      %40 = vsyncadd [#allocation6], %s39
      %s42 = sshll.u32 [#allocation7], 4
      %s43 = int_to_ptr.vmem [resolvable:$true] %s42
      %45 = dma.hbm_to_vmem [thread:$0]  %s2, 96, %s43, [#allocation6]
    $region13: #{tpu_custom_call.1} parent=1 // pred_fallthru
      _
    // Predicated region
    $region14: #{tpu_custom_call.1} parent=1 // pred_check
      _
    $region15: #{tpu_custom_call.1} parent=1 // pred_check_branch
      %47 = sbr.rel (0) target = $region17
    $region16: #{tpu_custom_call.1} parent=1 // pred_region
      %s49 = ssub.s32 12288, 12288
      %50 = vsyncadd [#allocation9], %s49
      %s51 = sshll.u32 [#allocation8], 4
      %s52 = int_to_ptr.vmem [resolvable:$true] %s51
      %57 = dma.hbm_to_vmem [thread:$0]  %s3, 12288, %s52, [#allocation9], 128, 128, 8
    $region17: #{tpu_custom_call.1} parent=1 // pred_fallthru
      _
    // Predicated region
    $region18: #{tpu_custom_call.1} parent=1 // pred_check
      _
    $region19: #{tpu_custom_call.1} parent=1 // pred_check_branch
      %59 = sbr.rel (0) target = $region21
    $region20: #{tpu_custom_call.1} parent=1 // pred_region
      %s61 = ssub.s32 32, 32
      %62 = vsyncadd [#allocation9], %s61
      %s64 = sshll.u32 [#allocation10], 4
      %s65 = int_to_ptr.vmem [resolvable:$true] %s64
      %67 = dma.hbm_to_vmem [thread:$0]  %s4, 32, %s65, [#allocation9]
    $region21: #{tpu_custom_call.1} parent=1 // pred_fallthru
      _
    // Predicated region
    $region22: #{tpu_custom_call.1} parent=1 // pred_check
      _
    $region23: #{tpu_custom_call.1} parent=1 // pred_check_branch
      %69 = sbr.rel (0) target = $region25
    $region24: #{tpu_custom_call.1} parent=1 // pred_region
      %70 = dma.done [#allocation3], 384
    $region25: #{tpu_custom_call.1} parent=1 // pred_fallthru
      _
    // Predicated region
    $region26: #{tpu_custom_call.1} parent=1 // pred_check
      _
    $region27: #{tpu_custom_call.1} parent=1 // pred_check_branch
      %72 = sbr.rel (0) target = $region29
    $region28: #{tpu_custom_call.1} parent=1 // pred_region
      %73 = dma.done [#allocation6], 36864
    $region29: #{tpu_custom_call.1} parent=1 // pred_fallthru
      _
    // Predicated region
    $region30: #{tpu_custom_call.1} parent=1 // pred_check
      _
    $region31: #{tpu_custom_call.1} parent=1 // pred_check_branch
      %75 = sbr.rel (0) target = $region33
    $region32: #{tpu_custom_call.1} parent=1 // pred_region
      %76 = dma.done [#allocation6], 96
    $region33: #{tpu_custom_call.1} parent=1 // pred_fallthru
      _
    // Predicated region
    $region34: #{tpu_custom_call.1} parent=1 // pred_check
      _
    $region35: #{tpu_custom_call.1} parent=1 // pred_check_branch
      %78 = sbr.rel (0) target = $region37
    $region36: #{tpu_custom_call.1} parent=1 // pred_region
      %79 = dma.done [#allocation9], 12288
    $region37: #{tpu_custom_call.1} parent=1 // pred_fallthru
      _
    // Predicated region
    $region38: #{tpu_custom_call.1} parent=1 // pred_check
      _
    $region39: #{tpu_custom_call.1} parent=1 // pred_check_branch
      %81 = sbr.rel (0) target = $region41
    $region40: #{tpu_custom_call.1} parent=1 // pred_region
      %82 = dma.done [#allocation9], 32
    $region41: #{tpu_custom_call.1} parent=1 // pred_fallthru
      _
    %v83 = vld [vmem:[#allocation2] sm:$0xff]
    %v84 = vld [vmem:[#allocation2 + $0x8] sm:$0xff]
    %v85 = vld [vmem:[#allocation2 + $0x10] sm:$0xff]
    %v86 = vld [vmem:[#allocation5] sm:$0xff]
    %v87 = vld [vmem:[#allocation5 + $0x8] sm:$0xff]
    %v88 = vld [vmem:[#allocation5 + $0x10] sm:$0xff]
    %v89 = vld [vmem:[#allocation5 + $0x18] sm:$0xff]
    %v90 = vld [vmem:[#allocation5 + $0x20] sm:$0xff]
    %v91 = vld [vmem:[#allocation5 + $0x28] sm:$0xff]
    %v92 = vld [vmem:[#allocation5 + $0x30] sm:$0xff]
    %v93 = vld [vmem:[#allocation5 + $0x38] sm:$0xff]
    %v94 = vld [vmem:[#allocation5 + $0x40] sm:$0xff]
    %v95 = vld [vmem:[#allocation5 + $0x48] sm:$0xff]
    %v96 = vld [vmem:[#allocation5 + $0x50] sm:$0xff]
    %v97 = vld [vmem:[#allocation5 + $0x58] sm:$0xff]
    %v98 = vld [vmem:[#allocation5 + $0x60] sm:$0xff]
    %v99 = vld [vmem:[#allocation5 + $0x68] sm:$0xff]
    %v100 = vld [vmem:[#allocation5 + $0x70] sm:$0xff]
    %v101 = vld [vmem:[#allocation5 + $0x78] sm:$0xff]
    %v102 = vld [vmem:[#allocation5 + $0x80] sm:$0xff]
    %v103 = vld [vmem:[#allocation5 + $0x88] sm:$0xff]
    %v104 = vld [vmem:[#allocation5 + $0x90] sm:$0xff]
    %v105 = vld [vmem:[#allocation5 + $0x98] sm:$0xff]
    %v106 = vld [vmem:[#allocation5 + $0xa0] sm:$0xff]
    %v107 = vld [vmem:[#allocation5 + $0xa8] sm:$0xff]
    %v108 = vld [vmem:[#allocation5 + $0xb0] sm:$0xff]
    %v109 = vld [vmem:[#allocation5 + $0xb8] sm:$0xff]
    %v110 = vld [vmem:[#allocation5 + $0xc0] sm:$0xff]
    %v111 = vld [vmem:[#allocation5 + $0xc8] sm:$0xff]
    %v112 = vld [vmem:[#allocation5 + $0xd0] sm:$0xff]
    %v113 = vld [vmem:[#allocation5 + $0xd8] sm:$0xff]
    %v114 = vld [vmem:[#allocation5 + $0xe0] sm:$0xff]
    %v115 = vld [vmem:[#allocation5 + $0xe8] sm:$0xff]
    %v116 = vld [vmem:[#allocation5 + $0xf0] sm:$0xff]
    %v117 = vld [vmem:[#allocation5 + $0xf8] sm:$0xff]
    %v118 = vld [vmem:[#allocation5 + $0x100] sm:$0xff]
    %v119 = vld [vmem:[#allocation5 + $0x108] sm:$0xff]
    %v120 = vld [vmem:[#allocation5 + $0x110] sm:$0xff]
    %v121 = vld [vmem:[#allocation5 + $0x118] sm:$0xff]
    %v122 = vld [vmem:[#allocation5 + $0x120] sm:$0xff]
    %v123 = vld [vmem:[#allocation5 + $0x128] sm:$0xff]
    %v124 = vld [vmem:[#allocation5 + $0x130] sm:$0xff]
    %v125 = vld [vmem:[#allocation5 + $0x138] sm:$0xff]
    %v126 = vld [vmem:[#allocation5 + $0x140] sm:$0xff]
    %v127 = vld [vmem:[#allocation5 + $0x148] sm:$0xff]
    %v128 = vld [vmem:[#allocation5 + $0x150] sm:$0xff]
    %v129 = vld [vmem:[#allocation5 + $0x158] sm:$0xff]
    %v130 = vld [vmem:[#allocation5 + $0x160] sm:$0xff]
    %v131 = vld [vmem:[#allocation5 + $0x168] sm:$0xff]
    %v132 = vld [vmem:[#allocation5 + $0x170] sm:$0xff]
    %v133 = vld [vmem:[#allocation5 + $0x178] sm:$0xff]
    %v134 = vld [vmem:[#allocation5 + $0x180] sm:$0xff]
    %v135 = vld [vmem:[#allocation5 + $0x188] sm:$0xff]
    %v136 = vld [vmem:[#allocation5 + $0x190] sm:$0xff]
    %v137 = vld [vmem:[#allocation5 + $0x198] sm:$0xff]
    %v138 = vld [vmem:[#allocation5 + $0x1a0] sm:$0xff]
    %v139 = vld [vmem:[#allocation5 + $0x1a8] sm:$0xff]
    %v140 = vld [vmem:[#allocation5 + $0x1b0] sm:$0xff]
    %v141 = vld [vmem:[#allocation5 + $0x1b8] sm:$0xff]
    %v142 = vld [vmem:[#allocation5 + $0x1c0] sm:$0xff]
    %v143 = vld [vmem:[#allocation5 + $0x1c8] sm:$0xff]
    %v144 = vld [vmem:[#allocation5 + $0x1d0] sm:$0xff]
    %v145 = vld [vmem:[#allocation5 + $0x1d8] sm:$0xff]
    %v146 = vld [vmem:[#allocation5 + $0x1e0] sm:$0xff]
    %v147 = vld [vmem:[#allocation5 + $0x1e8] sm:$0xff]
    %v148 = vld [vmem:[#allocation5 + $0x1f0] sm:$0xff]
    %v149 = vld [vmem:[#allocation5 + $0x1f8] sm:$0xff]
    %v150 = vld [vmem:[#allocation5 + $0x200] sm:$0xff]
    %v151 = vld [vmem:[#allocation5 + $0x208] sm:$0xff]
    %v152 = vld [vmem:[#allocation5 + $0x210] sm:$0xff]
    %v153 = vld [vmem:[#allocation5 + $0x218] sm:$0xff]
    %v154 = vld [vmem:[#allocation5 + $0x220] sm:$0xff]
    %v155 = vld [vmem:[#allocation5 + $0x228] sm:$0xff]
    %v156 = vld [vmem:[#allocation5 + $0x230] sm:$0xff]
    %v157 = vld [vmem:[#allocation5 + $0x238] sm:$0xff]
    %v158 = vld [vmem:[#allocation5 + $0x240] sm:$0xff]
    %v159 = vld [vmem:[#allocation5 + $0x248] sm:$0xff]
    %v160 = vld [vmem:[#allocation5 + $0x250] sm:$0xff]
    %v161 = vld [vmem:[#allocation5 + $0x258] sm:$0xff]
    %v162 = vld [vmem:[#allocation5 + $0x260] sm:$0xff]
    %v163 = vld [vmem:[#allocation5 + $0x268] sm:$0xff]
    %v164 = vld [vmem:[#allocation5 + $0x270] sm:$0xff]
    %v165 = vld [vmem:[#allocation5 + $0x278] sm:$0xff]
    %v166 = vld [vmem:[#allocation5 + $0x280] sm:$0xff]
    %v167 = vld [vmem:[#allocation5 + $0x288] sm:$0xff]
    %v168 = vld [vmem:[#allocation5 + $0x290] sm:$0xff]
    %v169 = vld [vmem:[#allocation5 + $0x298] sm:$0xff]
    %v170 = vld [vmem:[#allocation5 + $0x2a0] sm:$0xff]
    %v171 = vld [vmem:[#allocation5 + $0x2a8] sm:$0xff]
    %v172 = vld [vmem:[#allocation5 + $0x2b0] sm:$0xff]
    %v173 = vld [vmem:[#allocation5 + $0x2b8] sm:$0xff]
    %v174 = vld [vmem:[#allocation5 + $0x2c0] sm:$0xff]
    %v175 = vld [vmem:[#allocation5 + $0x2c8] sm:$0xff]
    %v176 = vld [vmem:[#allocation5 + $0x2d0] sm:$0xff]
    %v177 = vld [vmem:[#allocation5 + $0x2d8] sm:$0xff]
    %v178 = vld [vmem:[#allocation5 + $0x2e0] sm:$0xff]
    %v179 = vld [vmem:[#allocation5 + $0x2e8] sm:$0xff]
    %v180 = vld [vmem:[#allocation5 + $0x2f0] sm:$0xff]
    %v181 = vld [vmem:[#allocation5 + $0x2f8] sm:$0xff]
    %v182 = vld [vmem:[#allocation5 + $0x300] sm:$0xff]
    %v183 = vld [vmem:[#allocation5 + $0x308] sm:$0xff]
    %v184 = vld [vmem:[#allocation5 + $0x310] sm:$0xff]
    %v185 = vld [vmem:[#allocation5 + $0x318] sm:$0xff]
    %v186 = vld [vmem:[#allocation5 + $0x320] sm:$0xff]
    %v187 = vld [vmem:[#allocation5 + $0x328] sm:$0xff]
    %v188 = vld [vmem:[#allocation5 + $0x330] sm:$0xff]
    %v189 = vld [vmem:[#allocation5 + $0x338] sm:$0xff]
    %v190 = vld [vmem:[#allocation5 + $0x340] sm:$0xff]
    %v191 = vld [vmem:[#allocation5 + $0x348] sm:$0xff]
    %v192 = vld [vmem:[#allocation5 + $0x350] sm:$0xff]
    %v193 = vld [vmem:[#allocation5 + $0x358] sm:$0xff]
    %v194 = vld [vmem:[#allocation5 + $0x360] sm:$0xff]
    %v195 = vld [vmem:[#allocation5 + $0x368] sm:$0xff]
    %v196 = vld [vmem:[#allocation5 + $0x370] sm:$0xff]
    %v197 = vld [vmem:[#allocation5 + $0x378] sm:$0xff]
    %v198 = vld [vmem:[#allocation5 + $0x380] sm:$0xff]
    %v199 = vld [vmem:[#allocation5 + $0x388] sm:$0xff]
    %v200 = vld [vmem:[#allocation5 + $0x390] sm:$0xff]
    %v201 = vld [vmem:[#allocation5 + $0x398] sm:$0xff]
    %v202 = vld [vmem:[#allocation5 + $0x3a0] sm:$0xff]
    %v203 = vld [vmem:[#allocation5 + $0x3a8] sm:$0xff]
    %v204 = vld [vmem:[#allocation5 + $0x3b0] sm:$0xff]
    %v205 = vld [vmem:[#allocation5 + $0x3b8] sm:$0xff]
    %v206 = vld [vmem:[#allocation5 + $0x3c0] sm:$0xff]
    %v207 = vld [vmem:[#allocation5 + $0x3c8] sm:$0xff]
    %v208 = vld [vmem:[#allocation5 + $0x3d0] sm:$0xff]
    %v209 = vld [vmem:[#allocation5 + $0x3d8] sm:$0xff]
    %v210 = vld [vmem:[#allocation5 + $0x3e0] sm:$0xff]
    %v211 = vld [vmem:[#allocation5 + $0x3e8] sm:$0xff]
    %v212 = vld [vmem:[#allocation5 + $0x3f0] sm:$0xff]
    %v213 = vld [vmem:[#allocation5 + $0x3f8] sm:$0xff]
    %v214 = vld [vmem:[#allocation5 + $0x400] sm:$0xff]
    %v215 = vld [vmem:[#allocation5 + $0x408] sm:$0xff]
    %v216 = vld [vmem:[#allocation5 + $0x410] sm:$0xff]
    %v217 = vld [vmem:[#allocation5 + $0x418] sm:$0xff]
    %v218 = vld [vmem:[#allocation5 + $0x420] sm:$0xff]
    %v219 = vld [vmem:[#allocation5 + $0x428] sm:$0xff]
    %v220 = vld [vmem:[#allocation5 + $0x430] sm:$0xff]
    %v221 = vld [vmem:[#allocation5 + $0x438] sm:$0xff]
    %v222 = vld [vmem:[#allocation5 + $0x440] sm:$0xff]
    %v223 = vld [vmem:[#allocation5 + $0x448] sm:$0xff]
    %v224 = vld [vmem:[#allocation5 + $0x450] sm:$0xff]
    %v225 = vld [vmem:[#allocation5 + $0x458] sm:$0xff]
    %v226 = vld [vmem:[#allocation5 + $0x460] sm:$0xff]
    %v227 = vld [vmem:[#allocation5 + $0x468] sm:$0xff]
    %v228 = vld [vmem:[#allocation5 + $0x470] sm:$0xff]
    %v229 = vld [vmem:[#allocation5 + $0x478] sm:$0xff]
    %v230 = vld [vmem:[#allocation5 + $0x480] sm:$0xff]
    %v231 = vld [vmem:[#allocation5 + $0x488] sm:$0xff]
    %v232 = vld [vmem:[#allocation5 + $0x490] sm:$0xff]
    %v233 = vld [vmem:[#allocation5 + $0x498] sm:$0xff]
    %v234 = vld [vmem:[#allocation5 + $0x4a0] sm:$0xff]
    %v235 = vld [vmem:[#allocation5 + $0x4a8] sm:$0xff]
    %v236 = vld [vmem:[#allocation5 + $0x4b0] sm:$0xff]
    %v237 = vld [vmem:[#allocation5 + $0x4b8] sm:$0xff]
    %v238 = vld [vmem:[#allocation5 + $0x4c0] sm:$0xff]
    %v239 = vld [vmem:[#allocation5 + $0x4c8] sm:$0xff]
    %v240 = vld [vmem:[#allocation5 + $0x4d0] sm:$0xff]
    %v241 = vld [vmem:[#allocation5 + $0x4d8] sm:$0xff]
    %v242 = vld [vmem:[#allocation5 + $0x4e0] sm:$0xff]
    %v243 = vld [vmem:[#allocation5 + $0x4e8] sm:$0xff]
    %v244 = vld [vmem:[#allocation5 + $0x4f0] sm:$0xff]
    %v245 = vld [vmem:[#allocation5 + $0x4f8] sm:$0xff]
    %v246 = vld [vmem:[#allocation5 + $0x500] sm:$0xff]
    %v247 = vld [vmem:[#allocation5 + $0x508] sm:$0xff]
    %v248 = vld [vmem:[#allocation5 + $0x510] sm:$0xff]
    %v249 = vld [vmem:[#allocation5 + $0x518] sm:$0xff]
    %v250 = vld [vmem:[#allocation5 + $0x520] sm:$0xff]
    %v251 = vld [vmem:[#allocation5 + $0x528] sm:$0xff]
    %v252 = vld [vmem:[#allocation5 + $0x530] sm:$0xff]
    %v253 = vld [vmem:[#allocation5 + $0x538] sm:$0xff]
    %v254 = vld [vmem:[#allocation5 + $0x540] sm:$0xff]
    %v255 = vld [vmem:[#allocation5 + $0x548] sm:$0xff]
    %v256 = vld [vmem:[#allocation5 + $0x550] sm:$0xff]
    %v257 = vld [vmem:[#allocation5 + $0x558] sm:$0xff]
    %v258 = vld [vmem:[#allocation5 + $0x560] sm:$0xff]
    %v259 = vld [vmem:[#allocation5 + $0x568] sm:$0xff]
    %v260 = vld [vmem:[#allocation5 + $0x570] sm:$0xff]
    %v261 = vld [vmem:[#allocation5 + $0x578] sm:$0xff]
    %v262 = vld [vmem:[#allocation5 + $0x580] sm:$0xff]
    %v263 = vld [vmem:[#allocation5 + $0x588] sm:$0xff]
    %v264 = vld [vmem:[#allocation5 + $0x590] sm:$0xff]
    %v265 = vld [vmem:[#allocation5 + $0x598] sm:$0xff]
    %v266 = vld [vmem:[#allocation5 + $0x5a0] sm:$0xff]
    %v267 = vld [vmem:[#allocation5 + $0x5a8] sm:$0xff]
    %v268 = vld [vmem:[#allocation5 + $0x5b0] sm:$0xff]
    %v269 = vld [vmem:[#allocation5 + $0x5b8] sm:$0xff]
    %v270 = vld [vmem:[#allocation5 + $0x5c0] sm:$0xff]
    %v271 = vld [vmem:[#allocation5 + $0x5c8] sm:$0xff]
    %v272 = vld [vmem:[#allocation5 + $0x5d0] sm:$0xff]
    %v273 = vld [vmem:[#allocation5 + $0x5d8] sm:$0xff]
    %v274 = vld [vmem:[#allocation5 + $0x5e0] sm:$0xff]
    %v275 = vld [vmem:[#allocation5 + $0x5e8] sm:$0xff]
    %v276 = vld [vmem:[#allocation5 + $0x5f0] sm:$0xff]
    %v277 = vld [vmem:[#allocation5 + $0x5f8] sm:$0xff]
    %v278 = vld [vmem:[#allocation5 + $0x600] sm:$0xff]
    %v279 = vld [vmem:[#allocation5 + $0x608] sm:$0xff]
    %v280 = vld [vmem:[#allocation5 + $0x610] sm:$0xff]
    %v281 = vld [vmem:[#allocation5 + $0x618] sm:$0xff]
    %v282 = vld [vmem:[#allocation5 + $0x620] sm:$0xff]
    %v283 = vld [vmem:[#allocation5 + $0x628] sm:$0xff]
    %v284 = vld [vmem:[#allocation5 + $0x630] sm:$0xff]
    %v285 = vld [vmem:[#allocation5 + $0x638] sm:$0xff]
    %v286 = vld [vmem:[#allocation5 + $0x640] sm:$0xff]
    %v287 = vld [vmem:[#allocation5 + $0x648] sm:$0xff]
    %v288 = vld [vmem:[#allocation5 + $0x650] sm:$0xff]
    %v289 = vld [vmem:[#allocation5 + $0x658] sm:$0xff]
    %v290 = vld [vmem:[#allocation5 + $0x660] sm:$0xff]
    %v291 = vld [vmem:[#allocation5 + $0x668] sm:$0xff]
    %v292 = vld [vmem:[#allocation5 + $0x670] sm:$0xff]
    %v293 = vld [vmem:[#allocation5 + $0x678] sm:$0xff]
    %v294 = vld [vmem:[#allocation5 + $0x680] sm:$0xff]
    %v295 = vld [vmem:[#allocation5 + $0x688] sm:$0xff]
    %v296 = vld [vmem:[#allocation5 + $0x690] sm:$0xff]
    %v297 = vld [vmem:[#allocation5 + $0x698] sm:$0xff]
    %v298 = vld [vmem:[#allocation5 + $0x6a0] sm:$0xff]
    %v299 = vld [vmem:[#allocation5 + $0x6a8] sm:$0xff]
    %v300 = vld [vmem:[#allocation5 + $0x6b0] sm:$0xff]
    %v301 = vld [vmem:[#allocation5 + $0x6b8] sm:$0xff]
    %v302 = vld [vmem:[#allocation5 + $0x6c0] sm:$0xff]
    %v303 = vld [vmem:[#allocation5 + $0x6c8] sm:$0xff]
    %v304 = vld [vmem:[#allocation5 + $0x6d0] sm:$0xff]
    %v305 = vld [vmem:[#allocation5 + $0x6d8] sm:$0xff]
    %v306 = vld [vmem:[#allocation5 + $0x6e0] sm:$0xff]
    %v307 = vld [vmem:[#allocation5 + $0x6e8] sm:$0xff]
    %v308 = vld [vmem:[#allocation5 + $0x6f0] sm:$0xff]
    %v309 = vld [vmem:[#allocation5 + $0x6f8] sm:$0xff]
    %v310 = vld [vmem:[#allocation5 + $0x700] sm:$0xff]
    %v311 = vld [vmem:[#allocation5 + $0x708] sm:$0xff]
    %v312 = vld [vmem:[#allocation5 + $0x710] sm:$0xff]
    %v313 = vld [vmem:[#allocation5 + $0x718] sm:$0xff]
    %v314 = vld [vmem:[#allocation5 + $0x720] sm:$0xff]
    %v315 = vld [vmem:[#allocation5 + $0x728] sm:$0xff]
    %v316 = vld [vmem:[#allocation5 + $0x730] sm:$0xff]
    %v317 = vld [vmem:[#allocation5 + $0x738] sm:$0xff]
    %v318 = vld [vmem:[#allocation5 + $0x740] sm:$0xff]
    %v319 = vld [vmem:[#allocation5 + $0x748] sm:$0xff]
    %v320 = vld [vmem:[#allocation5 + $0x750] sm:$0xff]
    %v321 = vld [vmem:[#allocation5 + $0x758] sm:$0xff]
    %v322 = vld [vmem:[#allocation5 + $0x760] sm:$0xff]
    %v323 = vld [vmem:[#allocation5 + $0x768] sm:$0xff]
    %v324 = vld [vmem:[#allocation5 + $0x770] sm:$0xff]
    %v325 = vld [vmem:[#allocation5 + $0x778] sm:$0xff]
    %v326 = vld [vmem:[#allocation5 + $0x780] sm:$0xff]
    %v327 = vld [vmem:[#allocation5 + $0x788] sm:$0xff]
    %v328 = vld [vmem:[#allocation5 + $0x790] sm:$0xff]
    %v329 = vld [vmem:[#allocation5 + $0x798] sm:$0xff]
    %v330 = vld [vmem:[#allocation5 + $0x7a0] sm:$0xff]
    %v331 = vld [vmem:[#allocation5 + $0x7a8] sm:$0xff]
    %v332 = vld [vmem:[#allocation5 + $0x7b0] sm:$0xff]
    %v333 = vld [vmem:[#allocation5 + $0x7b8] sm:$0xff]
    %v334 = vld [vmem:[#allocation5 + $0x7c0] sm:$0xff]
    %v335 = vld [vmem:[#allocation5 + $0x7c8] sm:$0xff]
    %v336 = vld [vmem:[#allocation5 + $0x7d0] sm:$0xff]
    %v337 = vld [vmem:[#allocation5 + $0x7d8] sm:$0xff]
    %v338 = vld [vmem:[#allocation5 + $0x7e0] sm:$0xff]
    %v339 = vld [vmem:[#allocation5 + $0x7e8] sm:$0xff]
    %v340 = vld [vmem:[#allocation5 + $0x7f0] sm:$0xff]
    %v341 = vld [vmem:[#allocation5 + $0x7f8] sm:$0xff]
    %v342 = vld [vmem:[#allocation5 + $0x800] sm:$0xff]
    %v343 = vld [vmem:[#allocation5 + $0x808] sm:$0xff]
    %v344 = vld [vmem:[#allocation5 + $0x810] sm:$0xff]
    %v345 = vld [vmem:[#allocation5 + $0x818] sm:$0xff]
    %v346 = vld [vmem:[#allocation5 + $0x820] sm:$0xff]
    %v347 = vld [vmem:[#allocation5 + $0x828] sm:$0xff]
    %v348 = vld [vmem:[#allocation5 + $0x830] sm:$0xff]
    %v349 = vld [vmem:[#allocation5 + $0x838] sm:$0xff]
    %v350 = vld [vmem:[#allocation5 + $0x840] sm:$0xff]
    %v351 = vld [vmem:[#allocation5 + $0x848] sm:$0xff]
    %v352 = vld [vmem:[#allocation5 + $0x850] sm:$0xff]
    %v353 = vld [vmem:[#allocation5 + $0x858] sm:$0xff]
    %v354 = vld [vmem:[#allocation5 + $0x860] sm:$0xff]
    %v355 = vld [vmem:[#allocation5 + $0x868] sm:$0xff]
    %v356 = vld [vmem:[#allocation5 + $0x870] sm:$0xff]
    %v357 = vld [vmem:[#allocation5 + $0x878] sm:$0xff]
    %v358 = vld [vmem:[#allocation5 + $0x880] sm:$0xff]
    %v359 = vld [vmem:[#allocation5 + $0x888] sm:$0xff]
    %v360 = vld [vmem:[#allocation5 + $0x890] sm:$0xff]
    %v361 = vld [vmem:[#allocation5 + $0x898] sm:$0xff]
    %v362 = vld [vmem:[#allocation5 + $0x8a0] sm:$0xff]
    %v363 = vld [vmem:[#allocation5 + $0x8a8] sm:$0xff]
    %v364 = vld [vmem:[#allocation5 + $0x8b0] sm:$0xff]
    %v365 = vld [vmem:[#allocation5 + $0x8b8] sm:$0xff]
    %v366 = vld [vmem:[#allocation5 + $0x8c0] sm:$0xff]
    %v367 = vld [vmem:[#allocation5 + $0x8c8] sm:$0xff]
    %v368 = vld [vmem:[#allocation5 + $0x8d0] sm:$0xff]
    %v369 = vld [vmem:[#allocation5 + $0x8d8] sm:$0xff]
    %v370 = vld [vmem:[#allocation5 + $0x8e0] sm:$0xff]
    %v371 = vld [vmem:[#allocation5 + $0x8e8] sm:$0xff]
    %v372 = vld [vmem:[#allocation5 + $0x8f0] sm:$0xff]
    %v373 = vld [vmem:[#allocation5 + $0x8f8] sm:$0xff]
    %v374 = vld [vmem:[#allocation7] sm:$0x3f]
    %v376 = vlaneseq
    %v377 = vshrl.u32 %v376, 7
    %v378 = vsub.s32 0, %v377
    %v379 = vrot.slane %v374, %v378
    %v380 = vlaneseq
    %v381 = vshrl.u32 %v380, 7
    %v382 = vsub.s32 1, %v381
    %v383 = vrot.slane %v374, %v382
    %v384 = vlaneseq
    %v385 = vshrl.u32 %v384, 7
    %v386 = vsub.s32 2, %v385
    %v387 = vrot.slane %v374, %v386
    %v388 = vlaneseq
    %v389 = vshrl.u32 %v388, 7
    %v390 = vsub.s32 3, %v389
    %v391 = vrot.slane %v374, %v390
    %v392 = vlaneseq
    %v393 = vshrl.u32 %v392, 7
    %v394 = vsub.s32 4, %v393
    %v395 = vrot.slane %v374, %v394
    %v396 = vlaneseq
    %v397 = vshrl.u32 %v396, 7
    %v398 = vsub.s32 5, %v397
    %v399 = vrot.slane %v374, %v398
    %v409 = vunpack.c.l.b16 %v83
    %v410 = vunpack.c.h.b16 %v83
    %v411 = vunpack.c.l.b16 %v84
    %v412 = vunpack.c.h.b16 %v84
    %v413 = vunpack.c.l.b16 %v85
    %v414 = vunpack.c.h.b16 %v85
    %v415 = vpack.c.b16 %v409, %v409
    %v416 = vpack.c.b16 %v410, %v410
    %v417 = vpack.c.b16 %v411, %v411
    %v418 = vpack.c.b16 %v412, %v412
    %v419 = vpack.c.b16 %v413, %v413
    %v420 = vpack.c.b16 %v414, %v414
    %v715 = vunpack.c.l.b16 %v86
    %v716 = vunpack.c.h.b16 %v86
    %v717 = vunpack.c.l.b16 %v87
    %v718 = vunpack.c.h.b16 %v87
    %v719 = vunpack.c.l.b16 %v88
    %v720 = vunpack.c.h.b16 %v88
    %v721 = vunpack.c.l.b16 %v89
    %v722 = vunpack.c.h.b16 %v89
    %v723 = vunpack.c.l.b16 %v90
    %v724 = vunpack.c.h.b16 %v90
    %v725 = vunpack.c.l.b16 %v91
    %v726 = vunpack.c.h.b16 %v91
    %v727 = vunpack.c.l.b16 %v92
    %v728 = vunpack.c.h.b16 %v92
    %v729 = vunpack.c.l.b16 %v93
    %v730 = vunpack.c.h.b16 %v93
    %v731 = vunpack.c.l.b16 %v94
    %v732 = vunpack.c.h.b16 %v94
    %v733 = vunpack.c.l.b16 %v95
    %v734 = vunpack.c.h.b16 %v95
    %v735 = vunpack.c.l.b16 %v96
    %v736 = vunpack.c.h.b16 %v96
    %v737 = vunpack.c.l.b16 %v97
    %v738 = vunpack.c.h.b16 %v97
    %v739 = vunpack.c.l.b16 %v98
    %v740 = vunpack.c.h.b16 %v98
    %v741 = vunpack.c.l.b16 %v99
    %v742 = vunpack.c.h.b16 %v99
    %v743 = vunpack.c.l.b16 %v100
    %v744 = vunpack.c.h.b16 %v100
    %v745 = vunpack.c.l.b16 %v101
    %v746 = vunpack.c.h.b16 %v101
    %v747 = vunpack.c.l.b16 %v102
    %v748 = vunpack.c.h.b16 %v102
    %v749 = vunpack.c.l.b16 %v103
    %v750 = vunpack.c.h.b16 %v103
    %v751 = vunpack.c.l.b16 %v104
    %v752 = vunpack.c.h.b16 %v104
    %v753 = vunpack.c.l.b16 %v105
    %v754 = vunpack.c.h.b16 %v105
    %v755 = vunpack.c.l.b16 %v106
    %v756 = vunpack.c.h.b16 %v106
    %v757 = vunpack.c.l.b16 %v107
    %v758 = vunpack.c.h.b16 %v107
    %v759 = vunpack.c.l.b16 %v108
    %v760 = vunpack.c.h.b16 %v108
    %v761 = vunpack.c.l.b16 %v109
    %v762 = vunpack.c.h.b16 %v109
    %v763 = vunpack.c.l.b16 %v110
    %v764 = vunpack.c.h.b16 %v110
    %v765 = vunpack.c.l.b16 %v111
    %v766 = vunpack.c.h.b16 %v111
    %v767 = vunpack.c.l.b16 %v112
    %v768 = vunpack.c.h.b16 %v112
    %v769 = vunpack.c.l.b16 %v113
    %v770 = vunpack.c.h.b16 %v113
    %v771 = vunpack.c.l.b16 %v114
    %v772 = vunpack.c.h.b16 %v114
    %v773 = vunpack.c.l.b16 %v115
    %v774 = vunpack.c.h.b16 %v115
    %v775 = vunpack.c.l.b16 %v116
    %v776 = vunpack.c.h.b16 %v116
    %v777 = vunpack.c.l.b16 %v117
    %v778 = vunpack.c.h.b16 %v117
    %v779 = vunpack.c.l.b16 %v118
    %v780 = vunpack.c.h.b16 %v118
    %v781 = vunpack.c.l.b16 %v119
    %v782 = vunpack.c.h.b16 %v119
    %v783 = vunpack.c.l.b16 %v120
    %v784 = vunpack.c.h.b16 %v120
    %v785 = vunpack.c.l.b16 %v121
    %v786 = vunpack.c.h.b16 %v121
    %v787 = vunpack.c.l.b16 %v122
    %v788 = vunpack.c.h.b16 %v122
    %v789 = vunpack.c.l.b16 %v123
    %v790 = vunpack.c.h.b16 %v123
    %v791 = vunpack.c.l.b16 %v124
    %v792 = vunpack.c.h.b16 %v124
    %v793 = vunpack.c.l.b16 %v125
    %v794 = vunpack.c.h.b16 %v125
    %v795 = vunpack.c.l.b16 %v126
    %v796 = vunpack.c.h.b16 %v126
    %v797 = vunpack.c.l.b16 %v127
    %v798 = vunpack.c.h.b16 %v127
    %v799 = vunpack.c.l.b16 %v128
    %v800 = vunpack.c.h.b16 %v128
    %v801 = vunpack.c.l.b16 %v129
    %v802 = vunpack.c.h.b16 %v129
    %v803 = vunpack.c.l.b16 %v130
    %v804 = vunpack.c.h.b16 %v130
    %v805 = vunpack.c.l.b16 %v131
    %v806 = vunpack.c.h.b16 %v131
    %v807 = vunpack.c.l.b16 %v132
    %v808 = vunpack.c.h.b16 %v132
    %v809 = vunpack.c.l.b16 %v133
    %v810 = vunpack.c.h.b16 %v133
    %v811 = vunpack.c.l.b16 %v134
    %v812 = vunpack.c.h.b16 %v134
    %v813 = vunpack.c.l.b16 %v135
    %v814 = vunpack.c.h.b16 %v135
    %v815 = vunpack.c.l.b16 %v136
    %v816 = vunpack.c.h.b16 %v136
    %v817 = vunpack.c.l.b16 %v137
    %v818 = vunpack.c.h.b16 %v137
    %v819 = vunpack.c.l.b16 %v138
    %v820 = vunpack.c.h.b16 %v138
    %v821 = vunpack.c.l.b16 %v139
    %v822 = vunpack.c.h.b16 %v139
    %v823 = vunpack.c.l.b16 %v140
    %v824 = vunpack.c.h.b16 %v140
    %v825 = vunpack.c.l.b16 %v141
    %v826 = vunpack.c.h.b16 %v141
    %v827 = vunpack.c.l.b16 %v142
    %v828 = vunpack.c.h.b16 %v142
    %v829 = vunpack.c.l.b16 %v143
    %v830 = vunpack.c.h.b16 %v143
    %v831 = vunpack.c.l.b16 %v144
    %v832 = vunpack.c.h.b16 %v144
    %v833 = vunpack.c.l.b16 %v145
    %v834 = vunpack.c.h.b16 %v145
    %v835 = vunpack.c.l.b16 %v146
    %v836 = vunpack.c.h.b16 %v146
    %v837 = vunpack.c.l.b16 %v147
    %v838 = vunpack.c.h.b16 %v147
    %v839 = vunpack.c.l.b16 %v148
    %v840 = vunpack.c.h.b16 %v148
    %v841 = vunpack.c.l.b16 %v149
    %v842 = vunpack.c.h.b16 %v149
    %v843 = vunpack.c.l.b16 %v150
    %v844 = vunpack.c.h.b16 %v150
    %v845 = vunpack.c.l.b16 %v151
    %v846 = vunpack.c.h.b16 %v151
    %v847 = vunpack.c.l.b16 %v152
    %v848 = vunpack.c.h.b16 %v152
    %v849 = vunpack.c.l.b16 %v153
    %v850 = vunpack.c.h.b16 %v153
    %v851 = vunpack.c.l.b16 %v154
    %v852 = vunpack.c.h.b16 %v154
    %v853 = vunpack.c.l.b16 %v155
    %v854 = vunpack.c.h.b16 %v155
    %v855 = vunpack.c.l.b16 %v156
    %v856 = vunpack.c.h.b16 %v156
    %v857 = vunpack.c.l.b16 %v157
    %v858 = vunpack.c.h.b16 %v157
    %v859 = vunpack.c.l.b16 %v158
    %v860 = vunpack.c.h.b16 %v158
    %v861 = vunpack.c.l.b16 %v159
    %v862 = vunpack.c.h.b16 %v159
    %v863 = vunpack.c.l.b16 %v160
    %v864 = vunpack.c.h.b16 %v160
    %v865 = vunpack.c.l.b16 %v161
    %v866 = vunpack.c.h.b16 %v161
    %v867 = vunpack.c.l.b16 %v162
    %v868 = vunpack.c.h.b16 %v162
    %v869 = vunpack.c.l.b16 %v163
    %v870 = vunpack.c.h.b16 %v163
    %v871 = vunpack.c.l.b16 %v164
    %v872 = vunpack.c.h.b16 %v164
    %v873 = vunpack.c.l.b16 %v165
    %v874 = vunpack.c.h.b16 %v165
    %v875 = vunpack.c.l.b16 %v166
    %v876 = vunpack.c.h.b16 %v166
    %v877 = vunpack.c.l.b16 %v167
    %v878 = vunpack.c.h.b16 %v167
    %v879 = vunpack.c.l.b16 %v168
    %v880 = vunpack.c.h.b16 %v168
    %v881 = vunpack.c.l.b16 %v169
    %v882 = vunpack.c.h.b16 %v169
    %v883 = vunpack.c.l.b16 %v170
    %v884 = vunpack.c.h.b16 %v170
    %v885 = vunpack.c.l.b16 %v171
    %v886 = vunpack.c.h.b16 %v171
    %v887 = vunpack.c.l.b16 %v172
    %v888 = vunpack.c.h.b16 %v172
    %v889 = vunpack.c.l.b16 %v173
    %v890 = vunpack.c.h.b16 %v173
    %v891 = vunpack.c.l.b16 %v174
    %v892 = vunpack.c.h.b16 %v174
    %v893 = vunpack.c.l.b16 %v175
    %v894 = vunpack.c.h.b16 %v175
    %v895 = vunpack.c.l.b16 %v176
    %v896 = vunpack.c.h.b16 %v176
    %v897 = vunpack.c.l.b16 %v177
    %v898 = vunpack.c.h.b16 %v177
    %v899 = vunpack.c.l.b16 %v178
    %v900 = vunpack.c.h.b16 %v178
    %v901 = vunpack.c.l.b16 %v179
    %v902 = vunpack.c.h.b16 %v179
    %v903 = vunpack.c.l.b16 %v180
    %v904 = vunpack.c.h.b16 %v180
    %v905 = vunpack.c.l.b16 %v181
    %v906 = vunpack.c.h.b16 %v181
    %v907 = vunpack.c.l.b16 %v182
    %v908 = vunpack.c.h.b16 %v182
    %v909 = vunpack.c.l.b16 %v183
    %v910 = vunpack.c.h.b16 %v183
    %v911 = vunpack.c.l.b16 %v184
    %v912 = vunpack.c.h.b16 %v184
    %v913 = vunpack.c.l.b16 %v185
    %v914 = vunpack.c.h.b16 %v185
    %v915 = vunpack.c.l.b16 %v186
    %v916 = vunpack.c.h.b16 %v186
    %v917 = vunpack.c.l.b16 %v187
    %v918 = vunpack.c.h.b16 %v187
    %v919 = vunpack.c.l.b16 %v188
    %v920 = vunpack.c.h.b16 %v188
    %v921 = vunpack.c.l.b16 %v189
    %v922 = vunpack.c.h.b16 %v189
    %v923 = vunpack.c.l.b16 %v190
    %v924 = vunpack.c.h.b16 %v190
    %v925 = vunpack.c.l.b16 %v191
    %v926 = vunpack.c.h.b16 %v191
    %v927 = vunpack.c.l.b16 %v192
    %v928 = vunpack.c.h.b16 %v192
    %v929 = vunpack.c.l.b16 %v193
    %v930 = vunpack.c.h.b16 %v193
    %v931 = vunpack.c.l.b16 %v194
    %v932 = vunpack.c.h.b16 %v194
    %v933 = vunpack.c.l.b16 %v195
    %v934 = vunpack.c.h.b16 %v195
    %v935 = vunpack.c.l.b16 %v196
    %v936 = vunpack.c.h.b16 %v196
    %v937 = vunpack.c.l.b16 %v197
    %v938 = vunpack.c.h.b16 %v197
    %v939 = vunpack.c.l.b16 %v198
    %v940 = vunpack.c.h.b16 %v198
    %v941 = vunpack.c.l.b16 %v199
    %v942 = vunpack.c.h.b16 %v199
    %v943 = vunpack.c.l.b16 %v200
    %v944 = vunpack.c.h.b16 %v200
    %v945 = vunpack.c.l.b16 %v201
    %v946 = vunpack.c.h.b16 %v201
    %v947 = vunpack.c.l.b16 %v202
    %v948 = vunpack.c.h.b16 %v202
    %v949 = vunpack.c.l.b16 %v203
    %v950 = vunpack.c.h.b16 %v203
    %v951 = vunpack.c.l.b16 %v204
    %v952 = vunpack.c.h.b16 %v204
    %v953 = vunpack.c.l.b16 %v205
    %v954 = vunpack.c.h.b16 %v205
    %v955 = vunpack.c.l.b16 %v206
    %v956 = vunpack.c.h.b16 %v206
    %v957 = vunpack.c.l.b16 %v207
    %v958 = vunpack.c.h.b16 %v207
    %v959 = vunpack.c.l.b16 %v208
    %v960 = vunpack.c.h.b16 %v208
    %v961 = vunpack.c.l.b16 %v209
    %v962 = vunpack.c.h.b16 %v209
    %v963 = vunpack.c.l.b16 %v210
    %v964 = vunpack.c.h.b16 %v210
    %v965 = vunpack.c.l.b16 %v211
    %v966 = vunpack.c.h.b16 %v211
    %v967 = vunpack.c.l.b16 %v212
    %v968 = vunpack.c.h.b16 %v212
    %v969 = vunpack.c.l.b16 %v213
    %v970 = vunpack.c.h.b16 %v213
    %v971 = vunpack.c.l.b16 %v214
    %v972 = vunpack.c.h.b16 %v214
    %v973 = vunpack.c.l.b16 %v215
    %v974 = vunpack.c.h.b16 %v215
    %v975 = vunpack.c.l.b16 %v216
    %v976 = vunpack.c.h.b16 %v216
    %v977 = vunpack.c.l.b16 %v217
    %v978 = vunpack.c.h.b16 %v217
    %v979 = vunpack.c.l.b16 %v218
    %v980 = vunpack.c.h.b16 %v218
    %v981 = vunpack.c.l.b16 %v219
    %v982 = vunpack.c.h.b16 %v219
    %v983 = vunpack.c.l.b16 %v220
    %v984 = vunpack.c.h.b16 %v220
    %v985 = vunpack.c.l.b16 %v221
    %v986 = vunpack.c.h.b16 %v221
    %v987 = vunpack.c.l.b16 %v222
    %v988 = vunpack.c.h.b16 %v222
    %v989 = vunpack.c.l.b16 %v223
    %v990 = vunpack.c.h.b16 %v223
    %v991 = vunpack.c.l.b16 %v224
    %v992 = vunpack.c.h.b16 %v224
    %v993 = vunpack.c.l.b16 %v225
    %v994 = vunpack.c.h.b16 %v225
    %v995 = vunpack.c.l.b16 %v226
    %v996 = vunpack.c.h.b16 %v226
    %v997 = vunpack.c.l.b16 %v227
    %v998 = vunpack.c.h.b16 %v227
    %v999 = vunpack.c.l.b16 %v228
    %v1000 = vunpack.c.h.b16 %v228
    %v1001 = vunpack.c.l.b16 %v229
    %v1002 = vunpack.c.h.b16 %v229
    %v1003 = vunpack.c.l.b16 %v230
    %v1004 = vunpack.c.h.b16 %v230
    %v1005 = vunpack.c.l.b16 %v231
    %v1006 = vunpack.c.h.b16 %v231
    %v1007 = vunpack.c.l.b16 %v232
    %v1008 = vunpack.c.h.b16 %v232
    %v1009 = vunpack.c.l.b16 %v233
    %v1010 = vunpack.c.h.b16 %v233
    %v1011 = vunpack.c.l.b16 %v234
    %v1012 = vunpack.c.h.b16 %v234
    %v1013 = vunpack.c.l.b16 %v235
    %v1014 = vunpack.c.h.b16 %v235
    %v1015 = vunpack.c.l.b16 %v236
    %v1016 = vunpack.c.h.b16 %v236
    %v1017 = vunpack.c.l.b16 %v237
    %v1018 = vunpack.c.h.b16 %v237
    %v1019 = vunpack.c.l.b16 %v238
    %v1020 = vunpack.c.h.b16 %v238
    %v1021 = vunpack.c.l.b16 %v239
    %v1022 = vunpack.c.h.b16 %v239
    %v1023 = vunpack.c.l.b16 %v240
    %v1024 = vunpack.c.h.b16 %v240
    %v1025 = vunpack.c.l.b16 %v241
    %v1026 = vunpack.c.h.b16 %v241
    %v1027 = vunpack.c.l.b16 %v242
    %v1028 = vunpack.c.h.b16 %v242
    %v1029 = vunpack.c.l.b16 %v243
    %v1030 = vunpack.c.h.b16 %v243
    %v1031 = vunpack.c.l.b16 %v244
    %v1032 = vunpack.c.h.b16 %v244
    %v1033 = vunpack.c.l.b16 %v245
    %v1034 = vunpack.c.h.b16 %v245
    %v1035 = vunpack.c.l.b16 %v246
    %v1036 = vunpack.c.h.b16 %v246
    %v1037 = vunpack.c.l.b16 %v247
    %v1038 = vunpack.c.h.b16 %v247
    %v1039 = vunpack.c.l.b16 %v248
    %v1040 = vunpack.c.h.b16 %v248
    %v1041 = vunpack.c.l.b16 %v249
    %v1042 = vunpack.c.h.b16 %v249
    %v1043 = vunpack.c.l.b16 %v250
    %v1044 = vunpack.c.h.b16 %v250
    %v1045 = vunpack.c.l.b16 %v251
    %v1046 = vunpack.c.h.b16 %v251
    %v1047 = vunpack.c.l.b16 %v252
    %v1048 = vunpack.c.h.b16 %v252
    %v1049 = vunpack.c.l.b16 %v253
    %v1050 = vunpack.c.h.b16 %v253
    %v1051 = vunpack.c.l.b16 %v254
    %v1052 = vunpack.c.h.b16 %v254
    %v1053 = vunpack.c.l.b16 %v255
    %v1054 = vunpack.c.h.b16 %v255
    %v1055 = vunpack.c.l.b16 %v256
    %v1056 = vunpack.c.h.b16 %v256
    %v1057 = vunpack.c.l.b16 %v257
    %v1058 = vunpack.c.h.b16 %v257
    %v1059 = vunpack.c.l.b16 %v258
    %v1060 = vunpack.c.h.b16 %v258
    %v1061 = vunpack.c.l.b16 %v259
    %v1062 = vunpack.c.h.b16 %v259
    %v1063 = vunpack.c.l.b16 %v260
    %v1064 = vunpack.c.h.b16 %v260
    %v1065 = vunpack.c.l.b16 %v261
    %v1066 = vunpack.c.h.b16 %v261
    %v1067 = vunpack.c.l.b16 %v262
    %v1068 = vunpack.c.h.b16 %v262
    %v1069 = vunpack.c.l.b16 %v263
    %v1070 = vunpack.c.h.b16 %v263
    %v1071 = vunpack.c.l.b16 %v264
    %v1072 = vunpack.c.h.b16 %v264
    %v1073 = vunpack.c.l.b16 %v265
    %v1074 = vunpack.c.h.b16 %v265
    %v1075 = vunpack.c.l.b16 %v266
    %v1076 = vunpack.c.h.b16 %v266
    %v1077 = vunpack.c.l.b16 %v267
    %v1078 = vunpack.c.h.b16 %v267
    %v1079 = vunpack.c.l.b16 %v268
    %v1080 = vunpack.c.h.b16 %v268
    %v1081 = vunpack.c.l.b16 %v269
    %v1082 = vunpack.c.h.b16 %v269
    %v1083 = vunpack.c.l.b16 %v270
    %v1084 = vunpack.c.h.b16 %v270
    %v1085 = vunpack.c.l.b16 %v271
    %v1086 = vunpack.c.h.b16 %v271
    %v1087 = vunpack.c.l.b16 %v272
    %v1088 = vunpack.c.h.b16 %v272
    %v1089 = vunpack.c.l.b16 %v273
    %v1090 = vunpack.c.h.b16 %v273
    %v1091 = vunpack.c.l.b16 %v274
    %v1092 = vunpack.c.h.b16 %v274
    %v1093 = vunpack.c.l.b16 %v275
    %v1094 = vunpack.c.h.b16 %v275
    %v1095 = vunpack.c.l.b16 %v276
    %v1096 = vunpack.c.h.b16 %v276
    %v1097 = vunpack.c.l.b16 %v277
    %v1098 = vunpack.c.h.b16 %v277
    %v1099 = vunpack.c.l.b16 %v278
    %v1100 = vunpack.c.h.b16 %v278
    %v1101 = vunpack.c.l.b16 %v279
    %v1102 = vunpack.c.h.b16 %v279
    %v1103 = vunpack.c.l.b16 %v280
    %v1104 = vunpack.c.h.b16 %v280
    %v1105 = vunpack.c.l.b16 %v281
    %v1106 = vunpack.c.h.b16 %v281
    %v1107 = vunpack.c.l.b16 %v282
    %v1108 = vunpack.c.h.b16 %v282
    %v1109 = vunpack.c.l.b16 %v283
    %v1110 = vunpack.c.h.b16 %v283
    %v1111 = vunpack.c.l.b16 %v284
    %v1112 = vunpack.c.h.b16 %v284
    %v1113 = vunpack.c.l.b16 %v285
    %v1114 = vunpack.c.h.b16 %v285
    %v1115 = vunpack.c.l.b16 %v286
    %v1116 = vunpack.c.h.b16 %v286
    %v1117 = vunpack.c.l.b16 %v287
    %v1118 = vunpack.c.h.b16 %v287
    %v1119 = vunpack.c.l.b16 %v288
    %v1120 = vunpack.c.h.b16 %v288
    %v1121 = vunpack.c.l.b16 %v289
    %v1122 = vunpack.c.h.b16 %v289
    %v1123 = vunpack.c.l.b16 %v290
    %v1124 = vunpack.c.h.b16 %v290
    %v1125 = vunpack.c.l.b16 %v291
    %v1126 = vunpack.c.h.b16 %v291
    %v1127 = vunpack.c.l.b16 %v292
    %v1128 = vunpack.c.h.b16 %v292
    %v1129 = vunpack.c.l.b16 %v293
    %v1130 = vunpack.c.h.b16 %v293
    %v1131 = vunpack.c.l.b16 %v294
    %v1132 = vunpack.c.h.b16 %v294
    %v1133 = vunpack.c.l.b16 %v295
    %v1134 = vunpack.c.h.b16 %v295
    %v1135 = vunpack.c.l.b16 %v296
    %v1136 = vunpack.c.h.b16 %v296
    %v1137 = vunpack.c.l.b16 %v297
    %v1138 = vunpack.c.h.b16 %v297
    %v1139 = vunpack.c.l.b16 %v298
    %v1140 = vunpack.c.h.b16 %v298
    %v1141 = vunpack.c.l.b16 %v299
    %v1142 = vunpack.c.h.b16 %v299
    %v1143 = vunpack.c.l.b16 %v300
    %v1144 = vunpack.c.h.b16 %v300
    %v1145 = vunpack.c.l.b16 %v301
    %v1146 = vunpack.c.h.b16 %v301
    %v1147 = vunpack.c.l.b16 %v302
    %v1148 = vunpack.c.h.b16 %v302
    %v1149 = vunpack.c.l.b16 %v303
    %v1150 = vunpack.c.h.b16 %v303
    %v1151 = vunpack.c.l.b16 %v304
    %v1152 = vunpack.c.h.b16 %v304
    %v1153 = vunpack.c.l.b16 %v305
    %v1154 = vunpack.c.h.b16 %v305
    %v1155 = vunpack.c.l.b16 %v306
    %v1156 = vunpack.c.h.b16 %v306
    %v1157 = vunpack.c.l.b16 %v307
    %v1158 = vunpack.c.h.b16 %v307
    %v1159 = vunpack.c.l.b16 %v308
    %v1160 = vunpack.c.h.b16 %v308
    %v1161 = vunpack.c.l.b16 %v309
    %v1162 = vunpack.c.h.b16 %v309
    %v1163 = vunpack.c.l.b16 %v310
    %v1164 = vunpack.c.h.b16 %v310
    %v1165 = vunpack.c.l.b16 %v311
    %v1166 = vunpack.c.h.b16 %v311
    %v1167 = vunpack.c.l.b16 %v312
    %v1168 = vunpack.c.h.b16 %v312
    %v1169 = vunpack.c.l.b16 %v313
    %v1170 = vunpack.c.h.b16 %v313
    %v1171 = vunpack.c.l.b16 %v314
    %v1172 = vunpack.c.h.b16 %v314
    %v1173 = vunpack.c.l.b16 %v315
    %v1174 = vunpack.c.h.b16 %v315
    %v1175 = vunpack.c.l.b16 %v316
    %v1176 = vunpack.c.h.b16 %v316
    %v1177 = vunpack.c.l.b16 %v317
    %v1178 = vunpack.c.h.b16 %v317
    %v1179 = vunpack.c.l.b16 %v318
    %v1180 = vunpack.c.h.b16 %v318
    %v1181 = vunpack.c.l.b16 %v319
    %v1182 = vunpack.c.h.b16 %v319
    %v1183 = vunpack.c.l.b16 %v320
    %v1184 = vunpack.c.h.b16 %v320
    %v1185 = vunpack.c.l.b16 %v321
    %v1186 = vunpack.c.h.b16 %v321
    %v1187 = vunpack.c.l.b16 %v322
    %v1188 = vunpack.c.h.b16 %v322
    %v1189 = vunpack.c.l.b16 %v323
    %v1190 = vunpack.c.h.b16 %v323
    %v1191 = vunpack.c.l.b16 %v324
    %v1192 = vunpack.c.h.b16 %v324
    %v1193 = vunpack.c.l.b16 %v325
    %v1194 = vunpack.c.h.b16 %v325
    %v1195 = vunpack.c.l.b16 %v326
    %v1196 = vunpack.c.h.b16 %v326
    %v1197 = vunpack.c.l.b16 %v327
    %v1198 = vunpack.c.h.b16 %v327
    %v1199 = vunpack.c.l.b16 %v328
    %v1200 = vunpack.c.h.b16 %v328
    %v1201 = vunpack.c.l.b16 %v329
    %v1202 = vunpack.c.h.b16 %v329
    %v1203 = vunpack.c.l.b16 %v330
    %v1204 = vunpack.c.h.b16 %v330
    %v1205 = vunpack.c.l.b16 %v331
    %v1206 = vunpack.c.h.b16 %v331
    %v1207 = vunpack.c.l.b16 %v332
    %v1208 = vunpack.c.h.b16 %v332
    %v1209 = vunpack.c.l.b16 %v333
    %v1210 = vunpack.c.h.b16 %v333
    %v1211 = vunpack.c.l.b16 %v334
    %v1212 = vunpack.c.h.b16 %v334
    %v1213 = vunpack.c.l.b16 %v335
    %v1214 = vunpack.c.h.b16 %v335
    %v1215 = vunpack.c.l.b16 %v336
    %v1216 = vunpack.c.h.b16 %v336
    %v1217 = vunpack.c.l.b16 %v337
    %v1218 = vunpack.c.h.b16 %v337
    %v1219 = vunpack.c.l.b16 %v338
    %v1220 = vunpack.c.h.b16 %v338
    %v1221 = vunpack.c.l.b16 %v339
    %v1222 = vunpack.c.h.b16 %v339
    %v1223 = vunpack.c.l.b16 %v340
    %v1224 = vunpack.c.h.b16 %v340
    %v1225 = vunpack.c.l.b16 %v341
    %v1226 = vunpack.c.h.b16 %v341
    %v1227 = vunpack.c.l.b16 %v342
    %v1228 = vunpack.c.h.b16 %v342
    %v1229 = vunpack.c.l.b16 %v343
    %v1230 = vunpack.c.h.b16 %v343
    %v1231 = vunpack.c.l.b16 %v344
    %v1232 = vunpack.c.h.b16 %v344
    %v1233 = vunpack.c.l.b16 %v345
    %v1234 = vunpack.c.h.b16 %v345
    %v1235 = vunpack.c.l.b16 %v346
    %v1236 = vunpack.c.h.b16 %v346
    %v1237 = vunpack.c.l.b16 %v347
    %v1238 = vunpack.c.h.b16 %v347
    %v1239 = vunpack.c.l.b16 %v348
    %v1240 = vunpack.c.h.b16 %v348
    %v1241 = vunpack.c.l.b16 %v349
    %v1242 = vunpack.c.h.b16 %v349
    %v1243 = vunpack.c.l.b16 %v350
    %v1244 = vunpack.c.h.b16 %v350
    %v1245 = vunpack.c.l.b16 %v351
    %v1246 = vunpack.c.h.b16 %v351
    %v1247 = vunpack.c.l.b16 %v352
    %v1248 = vunpack.c.h.b16 %v352
    %v1249 = vunpack.c.l.b16 %v353
    %v1250 = vunpack.c.h.b16 %v353
    %v1251 = vunpack.c.l.b16 %v354
    %v1252 = vunpack.c.h.b16 %v354
    %v1253 = vunpack.c.l.b16 %v355
    %v1254 = vunpack.c.h.b16 %v355
    %v1255 = vunpack.c.l.b16 %v356
    %v1256 = vunpack.c.h.b16 %v356
    %v1257 = vunpack.c.l.b16 %v357
    %v1258 = vunpack.c.h.b16 %v357
    %v1259 = vunpack.c.l.b16 %v358
    %v1260 = vunpack.c.h.b16 %v358
    %v1261 = vunpack.c.l.b16 %v359
    %v1262 = vunpack.c.h.b16 %v359
    %v1263 = vunpack.c.l.b16 %v360
    %v1264 = vunpack.c.h.b16 %v360
    %v1265 = vunpack.c.l.b16 %v361
    %v1266 = vunpack.c.h.b16 %v361
    %v1267 = vunpack.c.l.b16 %v362
    %v1268 = vunpack.c.h.b16 %v362
    %v1269 = vunpack.c.l.b16 %v363
    %v1270 = vunpack.c.h.b16 %v363
    %v1271 = vunpack.c.l.b16 %v364
    %v1272 = vunpack.c.h.b16 %v364
    %v1273 = vunpack.c.l.b16 %v365
    %v1274 = vunpack.c.h.b16 %v365
    %v1275 = vunpack.c.l.b16 %v366
    %v1276 = vunpack.c.h.b16 %v366
    %v1277 = vunpack.c.l.b16 %v367
    %v1278 = vunpack.c.h.b16 %v367
    %v1279 = vunpack.c.l.b16 %v368
    %v1280 = vunpack.c.h.b16 %v368
    %v1281 = vunpack.c.l.b16 %v369
    %v1282 = vunpack.c.h.b16 %v369
    %v1283 = vunpack.c.l.b16 %v370
    %v1284 = vunpack.c.h.b16 %v370
    %v1285 = vunpack.c.l.b16 %v371
    %v1286 = vunpack.c.h.b16 %v371
    %v1287 = vunpack.c.l.b16 %v372
    %v1288 = vunpack.c.h.b16 %v372
    %v1289 = vunpack.c.l.b16 %v373
    %v1290 = vunpack.c.h.b16 %v373
    %v1291 = vpack.c.b16 %v721, %v715
    %v1292 = vpack.c.b16 %v722, %v716
    %v1293 = vpack.c.b16 %v723, %v717
    %v1294 = vpack.c.b16 %v724, %v718
    %v1295 = vpack.c.b16 %v725, %v719
    %v1296 = vpack.c.b16 %v726, %v720
    %v1297 = vpack.c.b16 %v733, %v727
    %v1298 = vpack.c.b16 %v734, %v728
    %v1299 = vpack.c.b16 %v735, %v729
    %v1300 = vpack.c.b16 %v736, %v730
    %v1301 = vpack.c.b16 %v737, %v731
    %v1302 = vpack.c.b16 %v738, %v732
    %v1303 = vpack.c.b16 %v745, %v739
    %v1304 = vpack.c.b16 %v746, %v740
    %v1305 = vpack.c.b16 %v747, %v741
    %v1306 = vpack.c.b16 %v748, %v742
    %v1307 = vpack.c.b16 %v749, %v743
    %v1308 = vpack.c.b16 %v750, %v744
    %v1309 = vpack.c.b16 %v757, %v751
    %v1310 = vpack.c.b16 %v758, %v752
    %v1311 = vpack.c.b16 %v759, %v753
    %v1312 = vpack.c.b16 %v760, %v754
    %v1313 = vpack.c.b16 %v761, %v755
    %v1314 = vpack.c.b16 %v762, %v756
    %v1315 = vpack.c.b16 %v769, %v763
    %v1316 = vpack.c.b16 %v770, %v764
    %v1317 = vpack.c.b16 %v771, %v765
    %v1318 = vpack.c.b16 %v772, %v766
    %v1319 = vpack.c.b16 %v773, %v767
    %v1320 = vpack.c.b16 %v774, %v768
    %v1321 = vpack.c.b16 %v781, %v775
    %v1322 = vpack.c.b16 %v782, %v776
    %v1323 = vpack.c.b16 %v783, %v777
    %v1324 = vpack.c.b16 %v784, %v778
    %v1325 = vpack.c.b16 %v785, %v779
    %v1326 = vpack.c.b16 %v786, %v780
    %v1327 = vpack.c.b16 %v793, %v787
    %v1328 = vpack.c.b16 %v794, %v788
    %v1329 = vpack.c.b16 %v795, %v789
    %v1330 = vpack.c.b16 %v796, %v790
    %v1331 = vpack.c.b16 %v797, %v791
    %v1332 = vpack.c.b16 %v798, %v792
    %v1333 = vpack.c.b16 %v805, %v799
    %v1334 = vpack.c.b16 %v806, %v800
    %v1335 = vpack.c.b16 %v807, %v801
    %v1336 = vpack.c.b16 %v808, %v802
    %v1337 = vpack.c.b16 %v809, %v803
    %v1338 = vpack.c.b16 %v810, %v804
    %v1339 = vpack.c.b16 %v817, %v811
    %v1340 = vpack.c.b16 %v818, %v812
    %v1341 = vpack.c.b16 %v819, %v813
    %v1342 = vpack.c.b16 %v820, %v814
    %v1343 = vpack.c.b16 %v821, %v815
    %v1344 = vpack.c.b16 %v822, %v816
    %v1345 = vpack.c.b16 %v829, %v823
    %v1346 = vpack.c.b16 %v830, %v824
    %v1347 = vpack.c.b16 %v831, %v825
    %v1348 = vpack.c.b16 %v832, %v826
    %v1349 = vpack.c.b16 %v833, %v827
    %v1350 = vpack.c.b16 %v834, %v828
    %v1351 = vpack.c.b16 %v841, %v835
    %v1352 = vpack.c.b16 %v842, %v836
    %v1353 = vpack.c.b16 %v843, %v837
    %v1354 = vpack.c.b16 %v844, %v838
    %v1355 = vpack.c.b16 %v845, %v839
    %v1356 = vpack.c.b16 %v846, %v840
    %v1357 = vpack.c.b16 %v853, %v847
    %v1358 = vpack.c.b16 %v854, %v848
    %v1359 = vpack.c.b16 %v855, %v849
    %v1360 = vpack.c.b16 %v856, %v850
    %v1361 = vpack.c.b16 %v857, %v851
    %v1362 = vpack.c.b16 %v858, %v852
    %v1363 = vpack.c.b16 %v865, %v859
    %v1364 = vpack.c.b16 %v866, %v860
    %v1365 = vpack.c.b16 %v867, %v861
    %v1366 = vpack.c.b16 %v868, %v862
    %v1367 = vpack.c.b16 %v869, %v863
    %v1368 = vpack.c.b16 %v870, %v864
    %v1369 = vpack.c.b16 %v877, %v871
    %v1370 = vpack.c.b16 %v878, %v872
    %v1371 = vpack.c.b16 %v879, %v873
    %v1372 = vpack.c.b16 %v880, %v874
    %v1373 = vpack.c.b16 %v881, %v875
    %v1374 = vpack.c.b16 %v882, %v876
    %v1375 = vpack.c.b16 %v889, %v883
    %v1376 = vpack.c.b16 %v890, %v884
    %v1377 = vpack.c.b16 %v891, %v885
    %v1378 = vpack.c.b16 %v892, %v886
    %v1379 = vpack.c.b16 %v893, %v887
    %v1380 = vpack.c.b16 %v894, %v888
    %v1381 = vpack.c.b16 %v901, %v895
    %v1382 = vpack.c.b16 %v902, %v896
    %v1383 = vpack.c.b16 %v903, %v897
    %v1384 = vpack.c.b16 %v904, %v898
    %v1385 = vpack.c.b16 %v905, %v899
    %v1386 = vpack.c.b16 %v906, %v900
    %v1387 = vpack.c.b16 %v913, %v907
    %v1388 = vpack.c.b16 %v914, %v908
    %v1389 = vpack.c.b16 %v915, %v909
    %v1390 = vpack.c.b16 %v916, %v910
    %v1391 = vpack.c.b16 %v917, %v911
    %v1392 = vpack.c.b16 %v918, %v912
    %v1393 = vpack.c.b16 %v925, %v919
    %v1394 = vpack.c.b16 %v926, %v920
    %v1395 = vpack.c.b16 %v927, %v921
    %v1396 = vpack.c.b16 %v928, %v922
    %v1397 = vpack.c.b16 %v929, %v923
    %v1398 = vpack.c.b16 %v930, %v924
    %v1399 = vpack.c.b16 %v937, %v931
    %v1400 = vpack.c.b16 %v938, %v932
    %v1401 = vpack.c.b16 %v939, %v933
    %v1402 = vpack.c.b16 %v940, %v934
    %v1403 = vpack.c.b16 %v941, %v935
    %v1404 = vpack.c.b16 %v942, %v936
    %v1405 = vpack.c.b16 %v949, %v943
    %v1406 = vpack.c.b16 %v950, %v944
    %v1407 = vpack.c.b16 %v951, %v945
    %v1408 = vpack.c.b16 %v952, %v946
    %v1409 = vpack.c.b16 %v953, %v947
    %v1410 = vpack.c.b16 %v954, %v948
    %v1411 = vpack.c.b16 %v961, %v955
    %v1412 = vpack.c.b16 %v962, %v956
    %v1413 = vpack.c.b16 %v963, %v957
    %v1414 = vpack.c.b16 %v964, %v958
    %v1415 = vpack.c.b16 %v965, %v959
    %v1416 = vpack.c.b16 %v966, %v960
    %v1417 = vpack.c.b16 %v973, %v967
    %v1418 = vpack.c.b16 %v974, %v968
    %v1419 = vpack.c.b16 %v975, %v969
    %v1420 = vpack.c.b16 %v976, %v970
    %v1421 = vpack.c.b16 %v977, %v971
    %v1422 = vpack.c.b16 %v978, %v972
    %v1423 = vpack.c.b16 %v985, %v979
    %v1424 = vpack.c.b16 %v986, %v980
    %v1425 = vpack.c.b16 %v987, %v981
    %v1426 = vpack.c.b16 %v988, %v982
    %v1427 = vpack.c.b16 %v989, %v983
    %v1428 = vpack.c.b16 %v990, %v984
    %v1429 = vpack.c.b16 %v997, %v991
    %v1430 = vpack.c.b16 %v998, %v992
    %v1431 = vpack.c.b16 %v999, %v993
    %v1432 = vpack.c.b16 %v1000, %v994
    %v1433 = vpack.c.b16 %v1001, %v995
    %v1434 = vpack.c.b16 %v1002, %v996
    %v1435 = vpack.c.b16 %v1009, %v1003
    %v1436 = vpack.c.b16 %v1010, %v1004
    %v1437 = vpack.c.b16 %v1011, %v1005
    %v1438 = vpack.c.b16 %v1012, %v1006
    %v1439 = vpack.c.b16 %v1013, %v1007
    %v1440 = vpack.c.b16 %v1014, %v1008
    %v1441 = vpack.c.b16 %v1021, %v1015
    %v1442 = vpack.c.b16 %v1022, %v1016
    %v1443 = vpack.c.b16 %v1023, %v1017
    %v1444 = vpack.c.b16 %v1024, %v1018
    %v1445 = vpack.c.b16 %v1025, %v1019
    %v1446 = vpack.c.b16 %v1026, %v1020
    %v1447 = vpack.c.b16 %v1033, %v1027
    %v1448 = vpack.c.b16 %v1034, %v1028
    %v1449 = vpack.c.b16 %v1035, %v1029
    %v1450 = vpack.c.b16 %v1036, %v1030
    %v1451 = vpack.c.b16 %v1037, %v1031
    %v1452 = vpack.c.b16 %v1038, %v1032
    %v1453 = vpack.c.b16 %v1045, %v1039
    %v1454 = vpack.c.b16 %v1046, %v1040
    %v1455 = vpack.c.b16 %v1047, %v1041
    %v1456 = vpack.c.b16 %v1048, %v1042
    %v1457 = vpack.c.b16 %v1049, %v1043
    %v1458 = vpack.c.b16 %v1050, %v1044
    %v1459 = vpack.c.b16 %v1057, %v1051
    %v1460 = vpack.c.b16 %v1058, %v1052
    %v1461 = vpack.c.b16 %v1059, %v1053
    %v1462 = vpack.c.b16 %v1060, %v1054
    %v1463 = vpack.c.b16 %v1061, %v1055
    %v1464 = vpack.c.b16 %v1062, %v1056
    %v1465 = vpack.c.b16 %v1069, %v1063
    %v1466 = vpack.c.b16 %v1070, %v1064
    %v1467 = vpack.c.b16 %v1071, %v1065
    %v1468 = vpack.c.b16 %v1072, %v1066
    %v1469 = vpack.c.b16 %v1073, %v1067
    %v1470 = vpack.c.b16 %v1074, %v1068
    %v1471 = vpack.c.b16 %v1081, %v1075
    %v1472 = vpack.c.b16 %v1082, %v1076
    %v1473 = vpack.c.b16 %v1083, %v1077
    %v1474 = vpack.c.b16 %v1084, %v1078
    %v1475 = vpack.c.b16 %v1085, %v1079
    %v1476 = vpack.c.b16 %v1086, %v1080
    %v1477 = vpack.c.b16 %v1093, %v1087
    %v1478 = vpack.c.b16 %v1094, %v1088
    %v1479 = vpack.c.b16 %v1095, %v1089
    %v1480 = vpack.c.b16 %v1096, %v1090
    %v1481 = vpack.c.b16 %v1097, %v1091
    %v1482 = vpack.c.b16 %v1098, %v1092
    %v1483 = vpack.c.b16 %v1105, %v1099
    %v1484 = vpack.c.b16 %v1106, %v1100
    %v1485 = vpack.c.b16 %v1107, %v1101
    %v1486 = vpack.c.b16 %v1108, %v1102
    %v1487 = vpack.c.b16 %v1109, %v1103
    %v1488 = vpack.c.b16 %v1110, %v1104
    %v1489 = vpack.c.b16 %v1117, %v1111
    %v1490 = vpack.c.b16 %v1118, %v1112
    %v1491 = vpack.c.b16 %v1119, %v1113
    %v1492 = vpack.c.b16 %v1120, %v1114
    %v1493 = vpack.c.b16 %v1121, %v1115
    %v1494 = vpack.c.b16 %v1122, %v1116
    %v1495 = vpack.c.b16 %v1129, %v1123
    %v1496 = vpack.c.b16 %v1130, %v1124
    %v1497 = vpack.c.b16 %v1131, %v1125
    %v1498 = vpack.c.b16 %v1132, %v1126
    %v1499 = vpack.c.b16 %v1133, %v1127
    %v1500 = vpack.c.b16 %v1134, %v1128
    %v1501 = vpack.c.b16 %v1141, %v1135
    %v1502 = vpack.c.b16 %v1142, %v1136
    %v1503 = vpack.c.b16 %v1143, %v1137
    %v1504 = vpack.c.b16 %v1144, %v1138
    %v1505 = vpack.c.b16 %v1145, %v1139
    %v1506 = vpack.c.b16 %v1146, %v1140
    %v1507 = vpack.c.b16 %v1153, %v1147
    %v1508 = vpack.c.b16 %v1154, %v1148
    %v1509 = vpack.c.b16 %v1155, %v1149
    %v1510 = vpack.c.b16 %v1156, %v1150
    %v1511 = vpack.c.b16 %v1157, %v1151
    %v1512 = vpack.c.b16 %v1158, %v1152
    %v1513 = vpack.c.b16 %v1165, %v1159
    %v1514 = vpack.c.b16 %v1166, %v1160
    %v1515 = vpack.c.b16 %v1167, %v1161
    %v1516 = vpack.c.b16 %v1168, %v1162
    %v1517 = vpack.c.b16 %v1169, %v1163
    %v1518 = vpack.c.b16 %v1170, %v1164
    %v1519 = vpack.c.b16 %v1177, %v1171
    %v1520 = vpack.c.b16 %v1178, %v1172
    %v1521 = vpack.c.b16 %v1179, %v1173
    %v1522 = vpack.c.b16 %v1180, %v1174
    %v1523 = vpack.c.b16 %v1181, %v1175
    %v1524 = vpack.c.b16 %v1182, %v1176
    %v1525 = vpack.c.b16 %v1189, %v1183
    %v1526 = vpack.c.b16 %v1190, %v1184
    %v1527 = vpack.c.b16 %v1191, %v1185
    %v1528 = vpack.c.b16 %v1192, %v1186
    %v1529 = vpack.c.b16 %v1193, %v1187
    %v1530 = vpack.c.b16 %v1194, %v1188
    %v1531 = vpack.c.b16 %v1201, %v1195
    %v1532 = vpack.c.b16 %v1202, %v1196
    %v1533 = vpack.c.b16 %v1203, %v1197
    %v1534 = vpack.c.b16 %v1204, %v1198
    %v1535 = vpack.c.b16 %v1205, %v1199
    %v1536 = vpack.c.b16 %v1206, %v1200
    %v1537 = vpack.c.b16 %v1213, %v1207
    %v1538 = vpack.c.b16 %v1214, %v1208
    %v1539 = vpack.c.b16 %v1215, %v1209
    %v1540 = vpack.c.b16 %v1216, %v1210
    %v1541 = vpack.c.b16 %v1217, %v1211
    %v1542 = vpack.c.b16 %v1218, %v1212
    %v1543 = vpack.c.b16 %v1225, %v1219
    %v1544 = vpack.c.b16 %v1226, %v1220
    %v1545 = vpack.c.b16 %v1227, %v1221
    %v1546 = vpack.c.b16 %v1228, %v1222
    %v1547 = vpack.c.b16 %v1229, %v1223
    %v1548 = vpack.c.b16 %v1230, %v1224
    %v1549 = vpack.c.b16 %v1237, %v1231
    %v1550 = vpack.c.b16 %v1238, %v1232
    %v1551 = vpack.c.b16 %v1239, %v1233
    %v1552 = vpack.c.b16 %v1240, %v1234
    %v1553 = vpack.c.b16 %v1241, %v1235
    %v1554 = vpack.c.b16 %v1242, %v1236
    %v1555 = vpack.c.b16 %v1249, %v1243
    %v1556 = vpack.c.b16 %v1250, %v1244
    %v1557 = vpack.c.b16 %v1251, %v1245
    %v1558 = vpack.c.b16 %v1252, %v1246
    %v1559 = vpack.c.b16 %v1253, %v1247
    %v1560 = vpack.c.b16 %v1254, %v1248
    %v1561 = vpack.c.b16 %v1261, %v1255
    %v1562 = vpack.c.b16 %v1262, %v1256
    %v1563 = vpack.c.b16 %v1263, %v1257
    %v1564 = vpack.c.b16 %v1264, %v1258
    %v1565 = vpack.c.b16 %v1265, %v1259
    %v1566 = vpack.c.b16 %v1266, %v1260
    %v1567 = vpack.c.b16 %v1273, %v1267
    %v1568 = vpack.c.b16 %v1274, %v1268
    %v1569 = vpack.c.b16 %v1275, %v1269
    %v1570 = vpack.c.b16 %v1276, %v1270
    %v1571 = vpack.c.b16 %v1277, %v1271
    %v1572 = vpack.c.b16 %v1278, %v1272
    %v1573 = vpack.c.b16 %v1285, %v1279
    %v1574 = vpack.c.b16 %v1286, %v1280
    %v1575 = vpack.c.b16 %v1287, %v1281
    %v1576 = vpack.c.b16 %v1288, %v1282
    %v1577 = vpack.c.b16 %v1289, %v1283
    %v1578 = vpack.c.b16 %v1290, %v1284
    %1867 = vmatprep.subr.bf16.mxu0 %v1292
    %1868 = vmatpush1.bf16.msra.mxu0 %v1291
    %1869 = vmatprep.subr.bf16.mxu0 %v1298
    %1870 = vmatpush1.bf16.msra.mxu0 %v1297
    %1871 = vmatprep.subr.bf16.mxu0 %v1304
    %1872 = vmatpush1.bf16.msra.mxu0 %v1303
    %1873 = vmatprep.subr.bf16.mxu0 %v1310
    %1874 = vmatpush1.bf16.msra.mxu0 %v1309
    %1875 = vmatprep.subr.bf16.mxu0 %v1316
    %1876 = vmatpush1.bf16.msra.mxu0 %v1315
    %1877 = vmatprep.subr.bf16.mxu0 %v1322
    %1878 = vmatpush1.bf16.msra.mxu0 %v1321
    %1879 = vmatprep.subr.bf16.mxu0 %v1328
    %1880 = vmatpush1.bf16.msra.mxu0 %v1327
    %1881 = vmatprep.subr.bf16.mxu0 %v1334
    %1882 = vmatpush1.bf16.msra.mxu0 %v1333
    %1883 = vmatprep.subr.bf16.mxu0 %v1340
    %1884 = vmatpush1.bf16.msra.mxu0 %v1339
    %1885 = vmatprep.subr.bf16.mxu0 %v1346
    %1886 = vmatpush1.bf16.msra.mxu0 %v1345
    %1887 = vmatprep.subr.bf16.mxu0 %v1352
    %1888 = vmatpush1.bf16.msra.mxu0 %v1351
    %1889 = vmatprep.subr.bf16.mxu0 %v1358
    %1890 = vmatpush1.bf16.msra.mxu0 %v1357
    %1891 = vmatprep.subr.bf16.mxu0 %v1364
    %1892 = vmatpush1.bf16.msra.mxu0 %v1363
    %1893 = vmatprep.subr.bf16.mxu0 %v1370
    %1894 = vmatpush1.bf16.msra.mxu0 %v1369
    %1895 = vmatprep.subr.bf16.mxu0 %v1376
    %1896 = vmatpush1.bf16.msra.mxu0 %v1375
    %1897 = vmatprep.subr.bf16.mxu0 %v1382
    %1898 = vmatpush1.bf16.msra.mxu0 %v1381
    %1899 = vmatprep.mubr.bf16.mxu0 %v416
    %1900 = vmatmul.mubr.bf16.gmra.mrb[0].mxu0 %v415
    %v1901 = vpop.f32.mrb[0].mxu0
    %v1902 = vadd.f32 %v379, %v1901
    %v1903 = vpop.f32.mrb[0].mxu0
    %v1904 = vadd.f32 %v383, %v1903
    %v1905 = vpop.f32.mrb[0].mxu0
    %v1906 = vpop.f32.mrb[0].mxu0
    %1907 = vdwg.mxu0
    %1908 = vmatprep.subr.bf16.mxu0 %v1388
    %1909 = vmatpush1.bf16.msra.mxu0 %v1387
    %1910 = vmatprep.subr.bf16.mxu0 %v1394
    %1911 = vmatpush1.bf16.msra.mxu0 %v1393
    %1912 = vmatprep.subr.bf16.mxu0 %v1400
    %1913 = vmatpush1.bf16.msra.mxu0 %v1399
    %1914 = vmatprep.subr.bf16.mxu0 %v1406
    %1915 = vmatpush1.bf16.msra.mxu0 %v1405
    %1916 = vmatprep.subr.bf16.mxu0 %v1412
    %1917 = vmatpush1.bf16.msra.mxu0 %v1411
    %1918 = vmatprep.subr.bf16.mxu0 %v1418
    %1919 = vmatpush1.bf16.msra.mxu0 %v1417
    %1920 = vmatprep.subr.bf16.mxu0 %v1424
    %1921 = vmatpush1.bf16.msra.mxu0 %v1423
    %1922 = vmatprep.subr.bf16.mxu0 %v1430
    %1923 = vmatpush1.bf16.msra.mxu0 %v1429
    %1924 = vmatprep.subr.bf16.mxu0 %v1436
    %1925 = vmatpush1.bf16.msra.mxu0 %v1435
    %1926 = vmatprep.subr.bf16.mxu0 %v1442
    %1927 = vmatpush1.bf16.msra.mxu0 %v1441
    %1928 = vmatprep.subr.bf16.mxu0 %v1448
    %1929 = vmatpush1.bf16.msra.mxu0 %v1447
    %1930 = vmatprep.subr.bf16.mxu0 %v1454
    %1931 = vmatpush1.bf16.msra.mxu0 %v1453
    %1932 = vmatprep.subr.bf16.mxu0 %v1460
    %1933 = vmatpush1.bf16.msra.mxu0 %v1459
    %1934 = vmatprep.subr.bf16.mxu0 %v1466
    %1935 = vmatpush1.bf16.msra.mxu0 %v1465
    %1936 = vmatprep.subr.bf16.mxu0 %v1472
    %1937 = vmatpush1.bf16.msra.mxu0 %v1471
    %1938 = vmatprep.subr.bf16.mxu0 %v1478
    %1939 = vmatpush1.bf16.msra.mxu0 %v1477
    %1940 = vmatprep.mubr.bf16.mxu0 %v418
    %1941 = vmatmul.mubr.bf16.gmra.mrb[0].mxu0 %v417
    %v1942 = vpop.f32.mrb[0].mxu0
    %v1943 = vadd.f32 %v1902, %v1942
    %v1944 = vpop.f32.mrb[0].mxu0
    %v1945 = vadd.f32 %v1904, %v1944
    %v1946 = vpop.f32.mrb[0].mxu0
    %v1947 = vpop.f32.mrb[0].mxu0
    %1948 = vdwg.mxu0
    %1949 = vmatprep.subr.bf16.mxu0 %v1484
    %1950 = vmatpush1.bf16.msra.mxu0 %v1483
    %1951 = vmatprep.subr.bf16.mxu0 %v1490
    %1952 = vmatpush1.bf16.msra.mxu0 %v1489
    %1953 = vmatprep.subr.bf16.mxu0 %v1496
    %1954 = vmatpush1.bf16.msra.mxu0 %v1495
    %1955 = vmatprep.subr.bf16.mxu0 %v1502
    %1956 = vmatpush1.bf16.msra.mxu0 %v1501
    %1957 = vmatprep.subr.bf16.mxu0 %v1508
    %1958 = vmatpush1.bf16.msra.mxu0 %v1507
    %1959 = vmatprep.subr.bf16.mxu0 %v1514
    %1960 = vmatpush1.bf16.msra.mxu0 %v1513
    %1961 = vmatprep.subr.bf16.mxu0 %v1520
    %1962 = vmatpush1.bf16.msra.mxu0 %v1519
    %1963 = vmatprep.subr.bf16.mxu0 %v1526
    %1964 = vmatpush1.bf16.msra.mxu0 %v1525
    %1965 = vmatprep.subr.bf16.mxu0 %v1532
    %1966 = vmatpush1.bf16.msra.mxu0 %v1531
    %1967 = vmatprep.subr.bf16.mxu0 %v1538
    %1968 = vmatpush1.bf16.msra.mxu0 %v1537
    %1969 = vmatprep.subr.bf16.mxu0 %v1544
    %1970 = vmatpush1.bf16.msra.mxu0 %v1543
    %1971 = vmatprep.subr.bf16.mxu0 %v1550
    %1972 = vmatpush1.bf16.msra.mxu0 %v1549
    %1973 = vmatprep.subr.bf16.mxu0 %v1556
    %1974 = vmatpush1.bf16.msra.mxu0 %v1555
    %1975 = vmatprep.subr.bf16.mxu0 %v1562
    %1976 = vmatpush1.bf16.msra.mxu0 %v1561
    %1977 = vmatprep.subr.bf16.mxu0 %v1568
    %1978 = vmatpush1.bf16.msra.mxu0 %v1567
    %1979 = vmatprep.subr.bf16.mxu0 %v1574
    %1980 = vmatpush1.bf16.msra.mxu0 %v1573
    %1981 = vmatprep.mubr.bf16.mxu0 %v420
    %1982 = vmatmul.mubr.bf16.gmra.mrb[0].mxu0 %v419
    %v1983 = vpop.f32.mrb[0].mxu0
    %v1984 = vadd.f32 %v1943, %v1983
    %v1985 = vpop.f32.mrb[0].mxu0
    %v1986 = vadd.f32 %v1945, %v1985
    %v1987 = vpop.f32.mrb[0].mxu0
    %v1988 = vpop.f32.mrb[0].mxu0
    %1989 = vdwg.mxu0
    %1990 = vmatprep.subr.bf16.mxu0 %v1294
    %1991 = vmatpush1.bf16.msra.mxu0 %v1293
    %1992 = vmatprep.subr.bf16.mxu0 %v1300
    %1993 = vmatpush1.bf16.msra.mxu0 %v1299
    %1994 = vmatprep.subr.bf16.mxu0 %v1306
    %1995 = vmatpush1.bf16.msra.mxu0 %v1305
    %1996 = vmatprep.subr.bf16.mxu0 %v1312
    %1997 = vmatpush1.bf16.msra.mxu0 %v1311
    %1998 = vmatprep.subr.bf16.mxu0 %v1318
    %1999 = vmatpush1.bf16.msra.mxu0 %v1317
    %2000 = vmatprep.subr.bf16.mxu0 %v1324
    %2001 = vmatpush1.bf16.msra.mxu0 %v1323
    %2002 = vmatprep.subr.bf16.mxu0 %v1330
    %2003 = vmatpush1.bf16.msra.mxu0 %v1329
    %2004 = vmatprep.subr.bf16.mxu0 %v1336
    %2005 = vmatpush1.bf16.msra.mxu0 %v1335
    %2006 = vmatprep.subr.bf16.mxu0 %v1342
    %2007 = vmatpush1.bf16.msra.mxu0 %v1341
    %2008 = vmatprep.subr.bf16.mxu0 %v1348
    %2009 = vmatpush1.bf16.msra.mxu0 %v1347
    %2010 = vmatprep.subr.bf16.mxu0 %v1354
    %2011 = vmatpush1.bf16.msra.mxu0 %v1353
    %2012 = vmatprep.subr.bf16.mxu0 %v1360
    %2013 = vmatpush1.bf16.msra.mxu0 %v1359
    %2014 = vmatprep.subr.bf16.mxu0 %v1366
    %2015 = vmatpush1.bf16.msra.mxu0 %v1365
    %2016 = vmatprep.subr.bf16.mxu0 %v1372
    %2017 = vmatpush1.bf16.msra.mxu0 %v1371
    %2018 = vmatprep.subr.bf16.mxu0 %v1378
    %2019 = vmatpush1.bf16.msra.mxu0 %v1377
    %2020 = vmatprep.subr.bf16.mxu0 %v1384
    %2021 = vmatpush1.bf16.msra.mxu0 %v1383
    %2022 = vmatprep.mubr.bf16.mxu0 %v416
    %2023 = vmatmul.mubr.bf16.gmra.mrb[0].mxu0 %v415
    %v2024 = vpop.f32.mrb[0].mxu0
    %v2025 = vadd.f32 %v387, %v2024
    %v2026 = vpop.f32.mrb[0].mxu0
    %v2027 = vadd.f32 %v391, %v2026
    %v2028 = vpop.f32.mrb[0].mxu0
    %v2029 = vpop.f32.mrb[0].mxu0
    %2030 = vdwg.mxu0
    %2031 = vmatprep.subr.bf16.mxu0 %v1390
    %2032 = vmatpush1.bf16.msra.mxu0 %v1389
    %2033 = vmatprep.subr.bf16.mxu0 %v1396
    %2034 = vmatpush1.bf16.msra.mxu0 %v1395
    %2035 = vmatprep.subr.bf16.mxu0 %v1402
    %2036 = vmatpush1.bf16.msra.mxu0 %v1401
    %2037 = vmatprep.subr.bf16.mxu0 %v1408
    %2038 = vmatpush1.bf16.msra.mxu0 %v1407
    %2039 = vmatprep.subr.bf16.mxu0 %v1414
    %2040 = vmatpush1.bf16.msra.mxu0 %v1413
    %2041 = vmatprep.subr.bf16.mxu0 %v1420
    %2042 = vmatpush1.bf16.msra.mxu0 %v1419
    %2043 = vmatprep.subr.bf16.mxu0 %v1426
    %2044 = vmatpush1.bf16.msra.mxu0 %v1425
    %2045 = vmatprep.subr.bf16.mxu0 %v1432
    %2046 = vmatpush1.bf16.msra.mxu0 %v1431
    %2047 = vmatprep.subr.bf16.mxu0 %v1438
    %2048 = vmatpush1.bf16.msra.mxu0 %v1437
    %2049 = vmatprep.subr.bf16.mxu0 %v1444
    %2050 = vmatpush1.bf16.msra.mxu0 %v1443
    %2051 = vmatprep.subr.bf16.mxu0 %v1450
    %2052 = vmatpush1.bf16.msra.mxu0 %v1449
    %2053 = vmatprep.subr.bf16.mxu0 %v1456
    %2054 = vmatpush1.bf16.msra.mxu0 %v1455
    %2055 = vmatprep.subr.bf16.mxu0 %v1462
    %2056 = vmatpush1.bf16.msra.mxu0 %v1461
    %2057 = vmatprep.subr.bf16.mxu0 %v1468
    %2058 = vmatpush1.bf16.msra.mxu0 %v1467
    %2059 = vmatprep.subr.bf16.mxu0 %v1474
    %2060 = vmatpush1.bf16.msra.mxu0 %v1473
    %2061 = vmatprep.subr.bf16.mxu0 %v1480
    %2062 = vmatpush1.bf16.msra.mxu0 %v1479
    %2063 = vmatprep.mubr.bf16.mxu0 %v418
    %2064 = vmatmul.mubr.bf16.gmra.mrb[0].mxu0 %v417
    %v2065 = vpop.f32.mrb[0].mxu0
    %v2066 = vadd.f32 %v2025, %v2065
    %v2067 = vpop.f32.mrb[0].mxu0
    %v2068 = vadd.f32 %v2027, %v2067
    %v2069 = vpop.f32.mrb[0].mxu0
    %v2070 = vpop.f32.mrb[0].mxu0
    %2071 = vdwg.mxu0
    %2072 = vmatprep.subr.bf16.mxu0 %v1486
    %2073 = vmatpush1.bf16.msra.mxu0 %v1485
    %2074 = vmatprep.subr.bf16.mxu0 %v1492
    %2075 = vmatpush1.bf16.msra.mxu0 %v1491
    %2076 = vmatprep.subr.bf16.mxu0 %v1498
    %2077 = vmatpush1.bf16.msra.mxu0 %v1497
    %2078 = vmatprep.subr.bf16.mxu0 %v1504
    %2079 = vmatpush1.bf16.msra.mxu0 %v1503
    %2080 = vmatprep.subr.bf16.mxu0 %v1510
    %2081 = vmatpush1.bf16.msra.mxu0 %v1509
    %2082 = vmatprep.subr.bf16.mxu0 %v1516
    %2083 = vmatpush1.bf16.msra.mxu0 %v1515
    %2084 = vmatprep.subr.bf16.mxu0 %v1522
    %2085 = vmatpush1.bf16.msra.mxu0 %v1521
    %2086 = vmatprep.subr.bf16.mxu0 %v1528
    %2087 = vmatpush1.bf16.msra.mxu0 %v1527
    %2088 = vmatprep.subr.bf16.mxu0 %v1534
    %2089 = vmatpush1.bf16.msra.mxu0 %v1533
    %2090 = vmatprep.subr.bf16.mxu0 %v1540
    %2091 = vmatpush1.bf16.msra.mxu0 %v1539
    %2092 = vmatprep.subr.bf16.mxu0 %v1546
    %2093 = vmatpush1.bf16.msra.mxu0 %v1545
    %2094 = vmatprep.subr.bf16.mxu0 %v1552
    %2095 = vmatpush1.bf16.msra.mxu0 %v1551
    %2096 = vmatprep.subr.bf16.mxu0 %v1558
    %2097 = vmatpush1.bf16.msra.mxu0 %v1557
    %2098 = vmatprep.subr.bf16.mxu0 %v1564
    %2099 = vmatpush1.bf16.msra.mxu0 %v1563
    %2100 = vmatprep.subr.bf16.mxu0 %v1570
    %2101 = vmatpush1.bf16.msra.mxu0 %v1569
    %2102 = vmatprep.subr.bf16.mxu0 %v1576
    %2103 = vmatpush1.bf16.msra.mxu0 %v1575
    %2104 = vmatprep.mubr.bf16.mxu0 %v420
    %2105 = vmatmul.mubr.bf16.gmra.mrb[0].mxu0 %v419
    %v2106 = vpop.f32.mrb[0].mxu0
    %v2107 = vadd.f32 %v2066, %v2106
    %v2108 = vpop.f32.mrb[0].mxu0
    %v2109 = vadd.f32 %v2068, %v2108
    %v2110 = vpop.f32.mrb[0].mxu0
    %v2111 = vpop.f32.mrb[0].mxu0
    %2112 = vdwg.mxu0
    %2113 = vmatprep.subr.bf16.mxu0 %v1296
    %2114 = vmatpush1.bf16.msra.mxu0 %v1295
    %2115 = vmatprep.subr.bf16.mxu0 %v1302
    %2116 = vmatpush1.bf16.msra.mxu0 %v1301
    %2117 = vmatprep.subr.bf16.mxu0 %v1308
    %2118 = vmatpush1.bf16.msra.mxu0 %v1307
    %2119 = vmatprep.subr.bf16.mxu0 %v1314
    %2120 = vmatpush1.bf16.msra.mxu0 %v1313
    %2121 = vmatprep.subr.bf16.mxu0 %v1320
    %2122 = vmatpush1.bf16.msra.mxu0 %v1319
    %2123 = vmatprep.subr.bf16.mxu0 %v1326
    %2124 = vmatpush1.bf16.msra.mxu0 %v1325
    %2125 = vmatprep.subr.bf16.mxu0 %v1332
    %2126 = vmatpush1.bf16.msra.mxu0 %v1331
    %2127 = vmatprep.subr.bf16.mxu0 %v1338
    %2128 = vmatpush1.bf16.msra.mxu0 %v1337
    %2129 = vmatprep.subr.bf16.mxu0 %v1344
    %2130 = vmatpush1.bf16.msra.mxu0 %v1343
    %2131 = vmatprep.subr.bf16.mxu0 %v1350
    %2132 = vmatpush1.bf16.msra.mxu0 %v1349
    %2133 = vmatprep.subr.bf16.mxu0 %v1356
    %2134 = vmatpush1.bf16.msra.mxu0 %v1355
    %2135 = vmatprep.subr.bf16.mxu0 %v1362
    %2136 = vmatpush1.bf16.msra.mxu0 %v1361
    %2137 = vmatprep.subr.bf16.mxu0 %v1368
    %2138 = vmatpush1.bf16.msra.mxu0 %v1367
    %2139 = vmatprep.subr.bf16.mxu0 %v1374
    %2140 = vmatpush1.bf16.msra.mxu0 %v1373
    %2141 = vmatprep.subr.bf16.mxu0 %v1380
    %2142 = vmatpush1.bf16.msra.mxu0 %v1379
    %2143 = vmatprep.subr.bf16.mxu0 %v1386
    %2144 = vmatpush1.bf16.msra.mxu0 %v1385
    %2145 = vmatprep.mubr.bf16.mxu0 %v416
    %2146 = vmatmul.mubr.bf16.gmra.mrb[0].mxu0 %v415
    %v2147 = vpop.f32.mrb[0].mxu0
    %v2148 = vadd.f32 %v395, %v2147
    %v2149 = vpop.f32.mrb[0].mxu0
    %v2150 = vadd.f32 %v399, %v2149
    %v2151 = vpop.f32.mrb[0].mxu0
    %v2152 = vpop.f32.mrb[0].mxu0
    %2153 = vdwg.mxu0
    %2154 = vmatprep.subr.bf16.mxu0 %v1392
    %2155 = vmatpush1.bf16.msra.mxu0 %v1391
    %2156 = vmatprep.subr.bf16.mxu0 %v1398
    %2157 = vmatpush1.bf16.msra.mxu0 %v1397
    %2158 = vmatprep.subr.bf16.mxu0 %v1404
    %2159 = vmatpush1.bf16.msra.mxu0 %v1403
    %2160 = vmatprep.subr.bf16.mxu0 %v1410
    %2161 = vmatpush1.bf16.msra.mxu0 %v1409
    %2162 = vmatprep.subr.bf16.mxu0 %v1416
    %2163 = vmatpush1.bf16.msra.mxu0 %v1415
    %2164 = vmatprep.subr.bf16.mxu0 %v1422
    %2165 = vmatpush1.bf16.msra.mxu0 %v1421
    %2166 = vmatprep.subr.bf16.mxu0 %v1428
    %2167 = vmatpush1.bf16.msra.mxu0 %v1427
    %2168 = vmatprep.subr.bf16.mxu0 %v1434
    %2169 = vmatpush1.bf16.msra.mxu0 %v1433
    %2170 = vmatprep.subr.bf16.mxu0 %v1440
    %2171 = vmatpush1.bf16.msra.mxu0 %v1439
    %2172 = vmatprep.subr.bf16.mxu0 %v1446
    %2173 = vmatpush1.bf16.msra.mxu0 %v1445
    %2174 = vmatprep.subr.bf16.mxu0 %v1452
    %2175 = vmatpush1.bf16.msra.mxu0 %v1451
    %2176 = vmatprep.subr.bf16.mxu0 %v1458
    %2177 = vmatpush1.bf16.msra.mxu0 %v1457
    %2178 = vmatprep.subr.bf16.mxu0 %v1464
    %2179 = vmatpush1.bf16.msra.mxu0 %v1463
    %2180 = vmatprep.subr.bf16.mxu0 %v1470
    %2181 = vmatpush1.bf16.msra.mxu0 %v1469
    %2182 = vmatprep.subr.bf16.mxu0 %v1476
    %2183 = vmatpush1.bf16.msra.mxu0 %v1475
    %2184 = vmatprep.subr.bf16.mxu0 %v1482
    %2185 = vmatpush1.bf16.msra.mxu0 %v1481
    %2186 = vmatprep.mubr.bf16.mxu0 %v418
    %2187 = vmatmul.mubr.bf16.gmra.mrb[0].mxu0 %v417
    %v2188 = vpop.f32.mrb[0].mxu0
    %v2189 = vadd.f32 %v2148, %v2188
    %v2190 = vpop.f32.mrb[0].mxu0
    %v2191 = vadd.f32 %v2150, %v2190
    %v2192 = vpop.f32.mrb[0].mxu0
    %v2193 = vpop.f32.mrb[0].mxu0
    %2194 = vdwg.mxu0
    %2195 = vmatprep.subr.bf16.mxu0 %v1488
    %2196 = vmatpush1.bf16.msra.mxu0 %v1487
    %2197 = vmatprep.subr.bf16.mxu0 %v1494
    %2198 = vmatpush1.bf16.msra.mxu0 %v1493
    %2199 = vmatprep.subr.bf16.mxu0 %v1500
    %2200 = vmatpush1.bf16.msra.mxu0 %v1499
    %2201 = vmatprep.subr.bf16.mxu0 %v1506
    %2202 = vmatpush1.bf16.msra.mxu0 %v1505
    %2203 = vmatprep.subr.bf16.mxu0 %v1512
    %2204 = vmatpush1.bf16.msra.mxu0 %v1511
    %2205 = vmatprep.subr.bf16.mxu0 %v1518
    %2206 = vmatpush1.bf16.msra.mxu0 %v1517
    %2207 = vmatprep.subr.bf16.mxu0 %v1524
    %2208 = vmatpush1.bf16.msra.mxu0 %v1523
    %2209 = vmatprep.subr.bf16.mxu0 %v1530
    %2210 = vmatpush1.bf16.msra.mxu0 %v1529
    %2211 = vmatprep.subr.bf16.mxu0 %v1536
    %2212 = vmatpush1.bf16.msra.mxu0 %v1535
    %2213 = vmatprep.subr.bf16.mxu0 %v1542
    %2214 = vmatpush1.bf16.msra.mxu0 %v1541
    %2215 = vmatprep.subr.bf16.mxu0 %v1548
    %2216 = vmatpush1.bf16.msra.mxu0 %v1547
    %2217 = vmatprep.subr.bf16.mxu0 %v1554
    %2218 = vmatpush1.bf16.msra.mxu0 %v1553
    %2219 = vmatprep.subr.bf16.mxu0 %v1560
    %2220 = vmatpush1.bf16.msra.mxu0 %v1559
    %2221 = vmatprep.subr.bf16.mxu0 %v1566
    %2222 = vmatpush1.bf16.msra.mxu0 %v1565
    %2223 = vmatprep.subr.bf16.mxu0 %v1572
    %2224 = vmatpush1.bf16.msra.mxu0 %v1571
    %2225 = vmatprep.subr.bf16.mxu0 %v1578
    %2226 = vmatpush1.bf16.msra.mxu0 %v1577
    %2227 = vmatprep.mubr.bf16.mxu0 %v420
    %2228 = vmatmul.mubr.bf16.gmra.mrb[0].mxu0 %v419
    %v2229 = vpop.f32.mrb[0].mxu0
    %v2230 = vadd.f32 %v2189, %v2229
    %v2231 = vpop.f32.mrb[0].mxu0
    %v2232 = vadd.f32 %v2191, %v2231
    %v2233 = vpop.f32.mrb[0].mxu0
    %v2234 = vpop.f32.mrb[0].mxu0
    %2235 = vdwg.mxu0
    %v2236 = vmax.f32 %v1984, 0.0
    %v2237 = vmax.f32 %v1986, 0.0
    %v2238 = vmax.f32 %v2107, 0.0
    %v2239 = vmax.f32 %v2109, 0.0
    %v2240 = vmax.f32 %v2230, 0.0
    %v2241 = vmax.f32 %v2232, 0.0
    %v2242 = vpack.c.bf16 %v2236, %v2236
    %v2243 = vpack.c.bf16 %v2237, %v2237
    %v2244 = vpack.c.bf16 %v2238, %v2238
    %v2245 = vpack.c.bf16 %v2239, %v2239
    %v2246 = vpack.c.bf16 %v2240, %v2240
    %v2247 = vpack.c.bf16 %v2241, %v2241
    %v2248 = vld [vmem:[#allocation8] sm:$0xff]
    %v2249 = vld [vmem:[#allocation8 + $0x8] sm:$0xff]
    %v2250 = vld [vmem:[#allocation8 + $0x10] sm:$0xff]
    %v2251 = vld [vmem:[#allocation8 + $0x18] sm:$0xff]
    %v2252 = vld [vmem:[#allocation8 + $0x20] sm:$0xff]
    %v2253 = vld [vmem:[#allocation8 + $0x28] sm:$0xff]
    %v2254 = vld [vmem:[#allocation8 + $0x30] sm:$0xff]
    %v2255 = vld [vmem:[#allocation8 + $0x38] sm:$0xff]
    %v2256 = vld [vmem:[#allocation8 + $0x40] sm:$0xff]
    %v2257 = vld [vmem:[#allocation8 + $0x48] sm:$0xff]
    %v2258 = vld [vmem:[#allocation8 + $0x50] sm:$0xff]
    %v2259 = vld [vmem:[#allocation8 + $0x58] sm:$0xff]
    %v2260 = vld [vmem:[#allocation8 + $0x60] sm:$0xff]
    %v2261 = vld [vmem:[#allocation8 + $0x68] sm:$0xff]
    %v2262 = vld [vmem:[#allocation8 + $0x70] sm:$0xff]
    %v2263 = vld [vmem:[#allocation8 + $0x78] sm:$0xff]
    %v2264 = vld [vmem:[#allocation8 + $0x80] sm:$0xff]
    %v2265 = vld [vmem:[#allocation8 + $0x88] sm:$0xff]
    %v2266 = vld [vmem:[#allocation8 + $0x90] sm:$0xff]
    %v2267 = vld [vmem:[#allocation8 + $0x98] sm:$0xff]
    %v2268 = vld [vmem:[#allocation8 + $0xa0] sm:$0xff]
    %v2269 = vld [vmem:[#allocation8 + $0xa8] sm:$0xff]
    %v2270 = vld [vmem:[#allocation8 + $0xb0] sm:$0xff]
    %v2271 = vld [vmem:[#allocation8 + $0xb8] sm:$0xff]
    %v2272 = vld [vmem:[#allocation8 + $0xc0] sm:$0xff]
    %v2273 = vld [vmem:[#allocation8 + $0xc8] sm:$0xff]
    %v2274 = vld [vmem:[#allocation8 + $0xd0] sm:$0xff]
    %v2275 = vld [vmem:[#allocation8 + $0xd8] sm:$0xff]
    %v2276 = vld [vmem:[#allocation8 + $0xe0] sm:$0xff]
    %v2277 = vld [vmem:[#allocation8 + $0xe8] sm:$0xff]
    %v2278 = vld [vmem:[#allocation8 + $0xf0] sm:$0xff]
    %v2279 = vld [vmem:[#allocation8 + $0xf8] sm:$0xff]
    %v2280 = vld [vmem:[#allocation8 + $0x100] sm:$0xff]
    %v2281 = vld [vmem:[#allocation8 + $0x108] sm:$0xff]
    %v2282 = vld [vmem:[#allocation8 + $0x110] sm:$0xff]
    %v2283 = vld [vmem:[#allocation8 + $0x118] sm:$0xff]
    %v2284 = vld [vmem:[#allocation8 + $0x120] sm:$0xff]
    %v2285 = vld [vmem:[#allocation8 + $0x128] sm:$0xff]
    %v2286 = vld [vmem:[#allocation8 + $0x130] sm:$0xff]
    %v2287 = vld [vmem:[#allocation8 + $0x138] sm:$0xff]
    %v2288 = vld [vmem:[#allocation8 + $0x140] sm:$0xff]
    %v2289 = vld [vmem:[#allocation8 + $0x148] sm:$0xff]
    %v2290 = vld [vmem:[#allocation8 + $0x150] sm:$0xff]
    %v2291 = vld [vmem:[#allocation8 + $0x158] sm:$0xff]
    %v2292 = vld [vmem:[#allocation8 + $0x160] sm:$0xff]
    %v2293 = vld [vmem:[#allocation8 + $0x168] sm:$0xff]
    %v2294 = vld [vmem:[#allocation8 + $0x170] sm:$0xff]
    %v2295 = vld [vmem:[#allocation8 + $0x178] sm:$0xff]
    %v2296 = vld [vmem:[#allocation8 + $0x180] sm:$0xff]
    %v2297 = vld [vmem:[#allocation8 + $0x188] sm:$0xff]
    %v2298 = vld [vmem:[#allocation8 + $0x190] sm:$0xff]
    %v2299 = vld [vmem:[#allocation8 + $0x198] sm:$0xff]
    %v2300 = vld [vmem:[#allocation8 + $0x1a0] sm:$0xff]
    %v2301 = vld [vmem:[#allocation8 + $0x1a8] sm:$0xff]
    %v2302 = vld [vmem:[#allocation8 + $0x1b0] sm:$0xff]
    %v2303 = vld [vmem:[#allocation8 + $0x1b8] sm:$0xff]
    %v2304 = vld [vmem:[#allocation8 + $0x1c0] sm:$0xff]
    %v2305 = vld [vmem:[#allocation8 + $0x1c8] sm:$0xff]
    %v2306 = vld [vmem:[#allocation8 + $0x1d0] sm:$0xff]
    %v2307 = vld [vmem:[#allocation8 + $0x1d8] sm:$0xff]
    %v2308 = vld [vmem:[#allocation8 + $0x1e0] sm:$0xff]
    %v2309 = vld [vmem:[#allocation8 + $0x1e8] sm:$0xff]
    %v2310 = vld [vmem:[#allocation8 + $0x1f0] sm:$0xff]
    %v2311 = vld [vmem:[#allocation8 + $0x1f8] sm:$0xff]
    %v2312 = vld [vmem:[#allocation8 + $0x200] sm:$0xff]
    %v2313 = vld [vmem:[#allocation8 + $0x208] sm:$0xff]
    %v2314 = vld [vmem:[#allocation8 + $0x210] sm:$0xff]
    %v2315 = vld [vmem:[#allocation8 + $0x218] sm:$0xff]
    %v2316 = vld [vmem:[#allocation8 + $0x220] sm:$0xff]
    %v2317 = vld [vmem:[#allocation8 + $0x228] sm:$0xff]
    %v2318 = vld [vmem:[#allocation8 + $0x230] sm:$0xff]
    %v2319 = vld [vmem:[#allocation8 + $0x238] sm:$0xff]
    %v2320 = vld [vmem:[#allocation8 + $0x240] sm:$0xff]
    %v2321 = vld [vmem:[#allocation8 + $0x248] sm:$0xff]
    %v2322 = vld [vmem:[#allocation8 + $0x250] sm:$0xff]
    %v2323 = vld [vmem:[#allocation8 + $0x258] sm:$0xff]
    %v2324 = vld [vmem:[#allocation8 + $0x260] sm:$0xff]
    %v2325 = vld [vmem:[#allocation8 + $0x268] sm:$0xff]
    %v2326 = vld [vmem:[#allocation8 + $0x270] sm:$0xff]
    %v2327 = vld [vmem:[#allocation8 + $0x278] sm:$0xff]
    %v2328 = vld [vmem:[#allocation8 + $0x280] sm:$0xff]
    %v2329 = vld [vmem:[#allocation8 + $0x288] sm:$0xff]
    %v2330 = vld [vmem:[#allocation8 + $0x290] sm:$0xff]
    %v2331 = vld [vmem:[#allocation8 + $0x298] sm:$0xff]
    %v2332 = vld [vmem:[#allocation8 + $0x2a0] sm:$0xff]
    %v2333 = vld [vmem:[#allocation8 + $0x2a8] sm:$0xff]
    %v2334 = vld [vmem:[#allocation8 + $0x2b0] sm:$0xff]
    %v2335 = vld [vmem:[#allocation8 + $0x2b8] sm:$0xff]
    %v2336 = vld [vmem:[#allocation8 + $0x2c0] sm:$0xff]
    %v2337 = vld [vmem:[#allocation8 + $0x2c8] sm:$0xff]
    %v2338 = vld [vmem:[#allocation8 + $0x2d0] sm:$0xff]
    %v2339 = vld [vmem:[#allocation8 + $0x2d8] sm:$0xff]
    %v2340 = vld [vmem:[#allocation8 + $0x2e0] sm:$0xff]
    %v2341 = vld [vmem:[#allocation8 + $0x2e8] sm:$0xff]
    %v2342 = vld [vmem:[#allocation8 + $0x2f0] sm:$0xff]
    %v2343 = vld [vmem:[#allocation8 + $0x2f8] sm:$0xff]
    %v2344 = vld [vmem:[#allocation10] sm:$0x3]
    %v2346 = vlaneseq
    %v2347 = vshrl.u32 %v2346, 7
    %v2348 = vsub.s32 0, %v2347
    %v2349 = vrot.slane %v2344, %v2348
    %v2350 = vlaneseq
    %v2351 = vshrl.u32 %v2350, 7
    %v2352 = vsub.s32 1, %v2351
    %v2353 = vrot.slane %v2344, %v2352
    %v2452 = vunpack.c.l.b16 %v2248
    %v2453 = vunpack.c.h.b16 %v2248
    %v2454 = vunpack.c.l.b16 %v2249
    %v2455 = vunpack.c.h.b16 %v2249
    %v2456 = vunpack.c.l.b16 %v2250
    %v2457 = vunpack.c.h.b16 %v2250
    %v2458 = vunpack.c.l.b16 %v2251
    %v2459 = vunpack.c.h.b16 %v2251
    %v2460 = vunpack.c.l.b16 %v2252
    %v2461 = vunpack.c.h.b16 %v2252
    %v2462 = vunpack.c.l.b16 %v2253
    %v2463 = vunpack.c.h.b16 %v2253
    %v2464 = vunpack.c.l.b16 %v2254
    %v2465 = vunpack.c.h.b16 %v2254
    %v2466 = vunpack.c.l.b16 %v2255
    %v2467 = vunpack.c.h.b16 %v2255
    %v2468 = vunpack.c.l.b16 %v2256
    %v2469 = vunpack.c.h.b16 %v2256
    %v2470 = vunpack.c.l.b16 %v2257
    %v2471 = vunpack.c.h.b16 %v2257
    %v2472 = vunpack.c.l.b16 %v2258
    %v2473 = vunpack.c.h.b16 %v2258
    %v2474 = vunpack.c.l.b16 %v2259
    %v2475 = vunpack.c.h.b16 %v2259
    %v2476 = vunpack.c.l.b16 %v2260
    %v2477 = vunpack.c.h.b16 %v2260
    %v2478 = vunpack.c.l.b16 %v2261
    %v2479 = vunpack.c.h.b16 %v2261
    %v2480 = vunpack.c.l.b16 %v2262
    %v2481 = vunpack.c.h.b16 %v2262
    %v2482 = vunpack.c.l.b16 %v2263
    %v2483 = vunpack.c.h.b16 %v2263
    %v2484 = vunpack.c.l.b16 %v2264
    %v2485 = vunpack.c.h.b16 %v2264
    %v2486 = vunpack.c.l.b16 %v2265
    %v2487 = vunpack.c.h.b16 %v2265
    %v2488 = vunpack.c.l.b16 %v2266
    %v2489 = vunpack.c.h.b16 %v2266
    %v2490 = vunpack.c.l.b16 %v2267
    %v2491 = vunpack.c.h.b16 %v2267
    %v2492 = vunpack.c.l.b16 %v2268
    %v2493 = vunpack.c.h.b16 %v2268
    %v2494 = vunpack.c.l.b16 %v2269
    %v2495 = vunpack.c.h.b16 %v2269
    %v2496 = vunpack.c.l.b16 %v2270
    %v2497 = vunpack.c.h.b16 %v2270
    %v2498 = vunpack.c.l.b16 %v2271
    %v2499 = vunpack.c.h.b16 %v2271
    %v2500 = vunpack.c.l.b16 %v2272
    %v2501 = vunpack.c.h.b16 %v2272
    %v2502 = vunpack.c.l.b16 %v2273
    %v2503 = vunpack.c.h.b16 %v2273
    %v2504 = vunpack.c.l.b16 %v2274
    %v2505 = vunpack.c.h.b16 %v2274
    %v2506 = vunpack.c.l.b16 %v2275
    %v2507 = vunpack.c.h.b16 %v2275
    %v2508 = vunpack.c.l.b16 %v2276
    %v2509 = vunpack.c.h.b16 %v2276
    %v2510 = vunpack.c.l.b16 %v2277
    %v2511 = vunpack.c.h.b16 %v2277
    %v2512 = vunpack.c.l.b16 %v2278
    %v2513 = vunpack.c.h.b16 %v2278
    %v2514 = vunpack.c.l.b16 %v2279
    %v2515 = vunpack.c.h.b16 %v2279
    %v2516 = vunpack.c.l.b16 %v2280
    %v2517 = vunpack.c.h.b16 %v2280
    %v2518 = vunpack.c.l.b16 %v2281
    %v2519 = vunpack.c.h.b16 %v2281
    %v2520 = vunpack.c.l.b16 %v2282
    %v2521 = vunpack.c.h.b16 %v2282
    %v2522 = vunpack.c.l.b16 %v2283
    %v2523 = vunpack.c.h.b16 %v2283
    %v2524 = vunpack.c.l.b16 %v2284
    %v2525 = vunpack.c.h.b16 %v2284
    %v2526 = vunpack.c.l.b16 %v2285
    %v2527 = vunpack.c.h.b16 %v2285
    %v2528 = vunpack.c.l.b16 %v2286
    %v2529 = vunpack.c.h.b16 %v2286
    %v2530 = vunpack.c.l.b16 %v2287
    %v2531 = vunpack.c.h.b16 %v2287
    %v2532 = vunpack.c.l.b16 %v2288
    %v2533 = vunpack.c.h.b16 %v2288
    %v2534 = vunpack.c.l.b16 %v2289
    %v2535 = vunpack.c.h.b16 %v2289
    %v2536 = vunpack.c.l.b16 %v2290
    %v2537 = vunpack.c.h.b16 %v2290
    %v2538 = vunpack.c.l.b16 %v2291
    %v2539 = vunpack.c.h.b16 %v2291
    %v2540 = vunpack.c.l.b16 %v2292
    %v2541 = vunpack.c.h.b16 %v2292
    %v2542 = vunpack.c.l.b16 %v2293
    %v2543 = vunpack.c.h.b16 %v2293
    %v2544 = vunpack.c.l.b16 %v2294
    %v2545 = vunpack.c.h.b16 %v2294
    %v2546 = vunpack.c.l.b16 %v2295
    %v2547 = vunpack.c.h.b16 %v2295
    %v2548 = vunpack.c.l.b16 %v2296
    %v2549 = vunpack.c.h.b16 %v2296
    %v2550 = vunpack.c.l.b16 %v2297
    %v2551 = vunpack.c.h.b16 %v2297
    %v2552 = vunpack.c.l.b16 %v2298
    %v2553 = vunpack.c.h.b16 %v2298
    %v2554 = vunpack.c.l.b16 %v2299
    %v2555 = vunpack.c.h.b16 %v2299
    %v2556 = vunpack.c.l.b16 %v2300
    %v2557 = vunpack.c.h.b16 %v2300
    %v2558 = vunpack.c.l.b16 %v2301
    %v2559 = vunpack.c.h.b16 %v2301
    %v2560 = vunpack.c.l.b16 %v2302
    %v2561 = vunpack.c.h.b16 %v2302
    %v2562 = vunpack.c.l.b16 %v2303
    %v2563 = vunpack.c.h.b16 %v2303
    %v2564 = vunpack.c.l.b16 %v2304
    %v2565 = vunpack.c.h.b16 %v2304
    %v2566 = vunpack.c.l.b16 %v2305
    %v2567 = vunpack.c.h.b16 %v2305
    %v2568 = vunpack.c.l.b16 %v2306
    %v2569 = vunpack.c.h.b16 %v2306
    %v2570 = vunpack.c.l.b16 %v2307
    %v2571 = vunpack.c.h.b16 %v2307
    %v2572 = vunpack.c.l.b16 %v2308
    %v2573 = vunpack.c.h.b16 %v2308
    %v2574 = vunpack.c.l.b16 %v2309
    %v2575 = vunpack.c.h.b16 %v2309
    %v2576 = vunpack.c.l.b16 %v2310
    %v2577 = vunpack.c.h.b16 %v2310
    %v2578 = vunpack.c.l.b16 %v2311
    %v2579 = vunpack.c.h.b16 %v2311
    %v2580 = vunpack.c.l.b16 %v2312
    %v2581 = vunpack.c.h.b16 %v2312
    %v2582 = vunpack.c.l.b16 %v2313
    %v2583 = vunpack.c.h.b16 %v2313
    %v2584 = vunpack.c.l.b16 %v2314
    %v2585 = vunpack.c.h.b16 %v2314
    %v2586 = vunpack.c.l.b16 %v2315
    %v2587 = vunpack.c.h.b16 %v2315
    %v2588 = vunpack.c.l.b16 %v2316
    %v2589 = vunpack.c.h.b16 %v2316
    %v2590 = vunpack.c.l.b16 %v2317
    %v2591 = vunpack.c.h.b16 %v2317
    %v2592 = vunpack.c.l.b16 %v2318
    %v2593 = vunpack.c.h.b16 %v2318
    %v2594 = vunpack.c.l.b16 %v2319
    %v2595 = vunpack.c.h.b16 %v2319
    %v2596 = vunpack.c.l.b16 %v2320
    %v2597 = vunpack.c.h.b16 %v2320
    %v2598 = vunpack.c.l.b16 %v2321
    %v2599 = vunpack.c.h.b16 %v2321
    %v2600 = vunpack.c.l.b16 %v2322
    %v2601 = vunpack.c.h.b16 %v2322
    %v2602 = vunpack.c.l.b16 %v2323
    %v2603 = vunpack.c.h.b16 %v2323
    %v2604 = vunpack.c.l.b16 %v2324
    %v2605 = vunpack.c.h.b16 %v2324
    %v2606 = vunpack.c.l.b16 %v2325
    %v2607 = vunpack.c.h.b16 %v2325
    %v2608 = vunpack.c.l.b16 %v2326
    %v2609 = vunpack.c.h.b16 %v2326
    %v2610 = vunpack.c.l.b16 %v2327
    %v2611 = vunpack.c.h.b16 %v2327
    %v2612 = vunpack.c.l.b16 %v2328
    %v2613 = vunpack.c.h.b16 %v2328
    %v2614 = vunpack.c.l.b16 %v2329
    %v2615 = vunpack.c.h.b16 %v2329
    %v2616 = vunpack.c.l.b16 %v2330
    %v2617 = vunpack.c.h.b16 %v2330
    %v2618 = vunpack.c.l.b16 %v2331
    %v2619 = vunpack.c.h.b16 %v2331
    %v2620 = vunpack.c.l.b16 %v2332
    %v2621 = vunpack.c.h.b16 %v2332
    %v2622 = vunpack.c.l.b16 %v2333
    %v2623 = vunpack.c.h.b16 %v2333
    %v2624 = vunpack.c.l.b16 %v2334
    %v2625 = vunpack.c.h.b16 %v2334
    %v2626 = vunpack.c.l.b16 %v2335
    %v2627 = vunpack.c.h.b16 %v2335
    %v2628 = vunpack.c.l.b16 %v2336
    %v2629 = vunpack.c.h.b16 %v2336
    %v2630 = vunpack.c.l.b16 %v2337
    %v2631 = vunpack.c.h.b16 %v2337
    %v2632 = vunpack.c.l.b16 %v2338
    %v2633 = vunpack.c.h.b16 %v2338
    %v2634 = vunpack.c.l.b16 %v2339
    %v2635 = vunpack.c.h.b16 %v2339
    %v2636 = vunpack.c.l.b16 %v2340
    %v2637 = vunpack.c.h.b16 %v2340
    %v2638 = vunpack.c.l.b16 %v2341
    %v2639 = vunpack.c.h.b16 %v2341
    %v2640 = vunpack.c.l.b16 %v2342
    %v2641 = vunpack.c.h.b16 %v2342
    %v2642 = vunpack.c.l.b16 %v2343
    %v2643 = vunpack.c.h.b16 %v2343
    %v2644 = vpack.c.b16 %v2454, %v2452
    %v2645 = vpack.c.b16 %v2455, %v2453
    %v2646 = vpack.c.b16 %v2458, %v2456
    %v2647 = vpack.c.b16 %v2459, %v2457
    %v2648 = vpack.c.b16 %v2462, %v2460
    %v2649 = vpack.c.b16 %v2463, %v2461
    %v2650 = vpack.c.b16 %v2466, %v2464
    %v2651 = vpack.c.b16 %v2467, %v2465
    %v2652 = vpack.c.b16 %v2470, %v2468
    %v2653 = vpack.c.b16 %v2471, %v2469
    %v2654 = vpack.c.b16 %v2474, %v2472
    %v2655 = vpack.c.b16 %v2475, %v2473
    %v2656 = vpack.c.b16 %v2478, %v2476
    %v2657 = vpack.c.b16 %v2479, %v2477
    %v2658 = vpack.c.b16 %v2482, %v2480
    %v2659 = vpack.c.b16 %v2483, %v2481
    %v2660 = vpack.c.b16 %v2486, %v2484
    %v2661 = vpack.c.b16 %v2487, %v2485
    %v2662 = vpack.c.b16 %v2490, %v2488
    %v2663 = vpack.c.b16 %v2491, %v2489
    %v2664 = vpack.c.b16 %v2494, %v2492
    %v2665 = vpack.c.b16 %v2495, %v2493
    %v2666 = vpack.c.b16 %v2498, %v2496
    %v2667 = vpack.c.b16 %v2499, %v2497
    %v2668 = vpack.c.b16 %v2502, %v2500
    %v2669 = vpack.c.b16 %v2503, %v2501
    %v2670 = vpack.c.b16 %v2506, %v2504
    %v2671 = vpack.c.b16 %v2507, %v2505
    %v2672 = vpack.c.b16 %v2510, %v2508
    %v2673 = vpack.c.b16 %v2511, %v2509
    %v2674 = vpack.c.b16 %v2514, %v2512
    %v2675 = vpack.c.b16 %v2515, %v2513
    %v2676 = vpack.c.b16 %v2518, %v2516
    %v2677 = vpack.c.b16 %v2519, %v2517
    %v2678 = vpack.c.b16 %v2522, %v2520
    %v2679 = vpack.c.b16 %v2523, %v2521
    %v2680 = vpack.c.b16 %v2526, %v2524
    %v2681 = vpack.c.b16 %v2527, %v2525
    %v2682 = vpack.c.b16 %v2530, %v2528
    %v2683 = vpack.c.b16 %v2531, %v2529
    %v2684 = vpack.c.b16 %v2534, %v2532
    %v2685 = vpack.c.b16 %v2535, %v2533
    %v2686 = vpack.c.b16 %v2538, %v2536
    %v2687 = vpack.c.b16 %v2539, %v2537
    %v2688 = vpack.c.b16 %v2542, %v2540
    %v2689 = vpack.c.b16 %v2543, %v2541
    %v2690 = vpack.c.b16 %v2546, %v2544
    %v2691 = vpack.c.b16 %v2547, %v2545
    %v2692 = vpack.c.b16 %v2550, %v2548
    %v2693 = vpack.c.b16 %v2551, %v2549
    %v2694 = vpack.c.b16 %v2554, %v2552
    %v2695 = vpack.c.b16 %v2555, %v2553
    %v2696 = vpack.c.b16 %v2558, %v2556
    %v2697 = vpack.c.b16 %v2559, %v2557
    %v2698 = vpack.c.b16 %v2562, %v2560
    %v2699 = vpack.c.b16 %v2563, %v2561
    %v2700 = vpack.c.b16 %v2566, %v2564
    %v2701 = vpack.c.b16 %v2567, %v2565
    %v2702 = vpack.c.b16 %v2570, %v2568
    %v2703 = vpack.c.b16 %v2571, %v2569
    %v2704 = vpack.c.b16 %v2574, %v2572
    %v2705 = vpack.c.b16 %v2575, %v2573
    %v2706 = vpack.c.b16 %v2578, %v2576
    %v2707 = vpack.c.b16 %v2579, %v2577
    %v2708 = vpack.c.b16 %v2582, %v2580
    %v2709 = vpack.c.b16 %v2583, %v2581
    %v2710 = vpack.c.b16 %v2586, %v2584
    %v2711 = vpack.c.b16 %v2587, %v2585
    %v2712 = vpack.c.b16 %v2590, %v2588
    %v2713 = vpack.c.b16 %v2591, %v2589
    %v2714 = vpack.c.b16 %v2594, %v2592
    %v2715 = vpack.c.b16 %v2595, %v2593
    %v2716 = vpack.c.b16 %v2598, %v2596
    %v2717 = vpack.c.b16 %v2599, %v2597
    %v2718 = vpack.c.b16 %v2602, %v2600
    %v2719 = vpack.c.b16 %v2603, %v2601
    %v2720 = vpack.c.b16 %v2606, %v2604
    %v2721 = vpack.c.b16 %v2607, %v2605
    %v2722 = vpack.c.b16 %v2610, %v2608
    %v2723 = vpack.c.b16 %v2611, %v2609
    %v2724 = vpack.c.b16 %v2614, %v2612
    %v2725 = vpack.c.b16 %v2615, %v2613
    %v2726 = vpack.c.b16 %v2618, %v2616
    %v2727 = vpack.c.b16 %v2619, %v2617
    %v2728 = vpack.c.b16 %v2622, %v2620
    %v2729 = vpack.c.b16 %v2623, %v2621
    %v2730 = vpack.c.b16 %v2626, %v2624
    %v2731 = vpack.c.b16 %v2627, %v2625
    %v2732 = vpack.c.b16 %v2630, %v2628
    %v2733 = vpack.c.b16 %v2631, %v2629
    %v2734 = vpack.c.b16 %v2634, %v2632
    %v2735 = vpack.c.b16 %v2635, %v2633
    %v2736 = vpack.c.b16 %v2638, %v2636
    %v2737 = vpack.c.b16 %v2639, %v2637
    %v2738 = vpack.c.b16 %v2642, %v2640
    %v2739 = vpack.c.b16 %v2643, %v2641
    %2836 = vmatprep.subr.bf16.mxu0 %v2645
    %2837 = vmatpush1.bf16.msra.mxu0 %v2644
    %2838 = vmatprep.subr.bf16.mxu0 %v2647
    %2839 = vmatpush1.bf16.msra.mxu0 %v2646
    %2840 = vmatprep.subr.bf16.mxu0 %v2649
    %2841 = vmatpush1.bf16.msra.mxu0 %v2648
    %2842 = vmatprep.subr.bf16.mxu0 %v2651
    %2843 = vmatpush1.bf16.msra.mxu0 %v2650
    %2844 = vmatprep.subr.bf16.mxu0 %v2653
    %2845 = vmatpush1.bf16.msra.mxu0 %v2652
    %2846 = vmatprep.subr.bf16.mxu0 %v2655
    %2847 = vmatpush1.bf16.msra.mxu0 %v2654
    %2848 = vmatprep.subr.bf16.mxu0 %v2657
    %2849 = vmatpush1.bf16.msra.mxu0 %v2656
    %2850 = vmatprep.subr.bf16.mxu0 %v2659
    %2851 = vmatpush1.bf16.msra.mxu0 %v2658
    %2852 = vmatprep.subr.bf16.mxu0 %v2661
    %2853 = vmatpush1.bf16.msra.mxu0 %v2660
    %2854 = vmatprep.subr.bf16.mxu0 %v2663
    %2855 = vmatpush1.bf16.msra.mxu0 %v2662
    %2856 = vmatprep.subr.bf16.mxu0 %v2665
    %2857 = vmatpush1.bf16.msra.mxu0 %v2664
    %2858 = vmatprep.subr.bf16.mxu0 %v2667
    %2859 = vmatpush1.bf16.msra.mxu0 %v2666
    %2860 = vmatprep.subr.bf16.mxu0 %v2669
    %2861 = vmatpush1.bf16.msra.mxu0 %v2668
    %2862 = vmatprep.subr.bf16.mxu0 %v2671
    %2863 = vmatpush1.bf16.msra.mxu0 %v2670
    %2864 = vmatprep.subr.bf16.mxu0 %v2673
    %2865 = vmatpush1.bf16.msra.mxu0 %v2672
    %2866 = vmatprep.subr.bf16.mxu0 %v2675
    %2867 = vmatpush1.bf16.msra.mxu0 %v2674
    %2868 = vmatprep.mubr.bf16.mxu0 %v2243
    %2869 = vmatmul.mubr.bf16.gmra.mrb[0].mxu0 %v2242
    %v2870 = vpop.f32.mrb[0].mxu0
    %v2871 = vadd.f32 %v2349, %v2870
    %v2872 = vpop.f32.mrb[0].mxu0
    %v2873 = vadd.f32 %v2353, %v2872
    %v2874 = vpop.f32.mrb[0].mxu0
    %v2875 = vpop.f32.mrb[0].mxu0
    %2876 = vdwg.mxu0
    %2877 = vmatprep.subr.bf16.mxu0 %v2677
    %2878 = vmatpush1.bf16.msra.mxu0 %v2676
    %2879 = vmatprep.subr.bf16.mxu0 %v2679
    %2880 = vmatpush1.bf16.msra.mxu0 %v2678
    %2881 = vmatprep.subr.bf16.mxu0 %v2681
    %2882 = vmatpush1.bf16.msra.mxu0 %v2680
    %2883 = vmatprep.subr.bf16.mxu0 %v2683
    %2884 = vmatpush1.bf16.msra.mxu0 %v2682
    %2885 = vmatprep.subr.bf16.mxu0 %v2685
    %2886 = vmatpush1.bf16.msra.mxu0 %v2684
    %2887 = vmatprep.subr.bf16.mxu0 %v2687
    %2888 = vmatpush1.bf16.msra.mxu0 %v2686
    %2889 = vmatprep.subr.bf16.mxu0 %v2689
    %2890 = vmatpush1.bf16.msra.mxu0 %v2688
    %2891 = vmatprep.subr.bf16.mxu0 %v2691
    %2892 = vmatpush1.bf16.msra.mxu0 %v2690
    %2893 = vmatprep.subr.bf16.mxu0 %v2693
    %2894 = vmatpush1.bf16.msra.mxu0 %v2692
    %2895 = vmatprep.subr.bf16.mxu0 %v2695
    %2896 = vmatpush1.bf16.msra.mxu0 %v2694
    %2897 = vmatprep.subr.bf16.mxu0 %v2697
    %2898 = vmatpush1.bf16.msra.mxu0 %v2696
    %2899 = vmatprep.subr.bf16.mxu0 %v2699
    %2900 = vmatpush1.bf16.msra.mxu0 %v2698
    %2901 = vmatprep.subr.bf16.mxu0 %v2701
    %2902 = vmatpush1.bf16.msra.mxu0 %v2700
    %2903 = vmatprep.subr.bf16.mxu0 %v2703
    %2904 = vmatpush1.bf16.msra.mxu0 %v2702
    %2905 = vmatprep.subr.bf16.mxu0 %v2705
    %2906 = vmatpush1.bf16.msra.mxu0 %v2704
    %2907 = vmatprep.subr.bf16.mxu0 %v2707
    %2908 = vmatpush1.bf16.msra.mxu0 %v2706
    %2909 = vmatprep.mubr.bf16.mxu0 %v2245
    %2910 = vmatmul.mubr.bf16.gmra.mrb[0].mxu0 %v2244
    %v2911 = vpop.f32.mrb[0].mxu0
    %v2912 = vadd.f32 %v2871, %v2911
    %v2913 = vpop.f32.mrb[0].mxu0
    %v2914 = vadd.f32 %v2873, %v2913
    %v2915 = vpop.f32.mrb[0].mxu0
    %v2916 = vpop.f32.mrb[0].mxu0
    %2917 = vdwg.mxu0
    %2918 = vmatprep.subr.bf16.mxu0 %v2709
    %2919 = vmatpush1.bf16.msra.mxu0 %v2708
    %2920 = vmatprep.subr.bf16.mxu0 %v2711
    %2921 = vmatpush1.bf16.msra.mxu0 %v2710
    %2922 = vmatprep.subr.bf16.mxu0 %v2713
    %2923 = vmatpush1.bf16.msra.mxu0 %v2712
    %2924 = vmatprep.subr.bf16.mxu0 %v2715
    %2925 = vmatpush1.bf16.msra.mxu0 %v2714
    %2926 = vmatprep.subr.bf16.mxu0 %v2717
    %2927 = vmatpush1.bf16.msra.mxu0 %v2716
    %2928 = vmatprep.subr.bf16.mxu0 %v2719
    %2929 = vmatpush1.bf16.msra.mxu0 %v2718
    %2930 = vmatprep.subr.bf16.mxu0 %v2721
    %2931 = vmatpush1.bf16.msra.mxu0 %v2720
    %2932 = vmatprep.subr.bf16.mxu0 %v2723
    %2933 = vmatpush1.bf16.msra.mxu0 %v2722
    %2934 = vmatprep.subr.bf16.mxu0 %v2725
    %2935 = vmatpush1.bf16.msra.mxu0 %v2724
    %2936 = vmatprep.subr.bf16.mxu0 %v2727
    %2937 = vmatpush1.bf16.msra.mxu0 %v2726
    %2938 = vmatprep.subr.bf16.mxu0 %v2729
    %2939 = vmatpush1.bf16.msra.mxu0 %v2728
    %2940 = vmatprep.subr.bf16.mxu0 %v2731
    %2941 = vmatpush1.bf16.msra.mxu0 %v2730
    %2942 = vmatprep.subr.bf16.mxu0 %v2733
    %2943 = vmatpush1.bf16.msra.mxu0 %v2732
    %2944 = vmatprep.subr.bf16.mxu0 %v2735
    %2945 = vmatpush1.bf16.msra.mxu0 %v2734
    %2946 = vmatprep.subr.bf16.mxu0 %v2737
    %2947 = vmatpush1.bf16.msra.mxu0 %v2736
    %2948 = vmatprep.subr.bf16.mxu0 %v2739
    %2949 = vmatpush1.bf16.msra.mxu0 %v2738
    %2950 = vmatprep.mubr.bf16.mxu0 %v2247
    %2951 = vmatmul.mubr.bf16.gmra.mrb[0].mxu0 %v2246
    %v2952 = vpop.f32.mrb[0].mxu0
    %v2953 = vadd.f32 %v2912, %v2952
    %v2954 = vpop.f32.mrb[0].mxu0
    %v2955 = vadd.f32 %v2914, %v2954
    %v2956 = vpop.f32.mrb[0].mxu0
    %v2957 = vpop.f32.mrb[0].mxu0
    %2958 = vdwg.mxu0
    %2959 = vst [vmem:[#allocation11] sm:$0xff] %v2953
    %2960 = vst [vmem:[#allocation11 + $0x8] sm:$0xff] %v2955
    // Predicated region
    $region42: #{tpu_custom_call.1} parent=1 // pred_check
      _
    $region43: #{tpu_custom_call.1} parent=1 // pred_check_branch
      %2962 = sbr.rel (0) target = $region45
    $region44: #{tpu_custom_call.1} parent=1 // pred_region
      %s2964 = ssub.s32 256, 256
      %2965 = vsyncadd [#allocation4], %s2964
      %s2967 = sshll.u32 [#allocation11], 4
      %s2968 = int_to_ptr.vmem [resolvable:$true] %s2967
      %2970 = dma.vmem_to_hbm [thread:$0]  %s2968, 256, %s5, [#allocation4]
    $region45: #{tpu_custom_call.1} parent=1 // pred_fallthru
      _
    // Predicated region
    $region46: #{tpu_custom_call.1} parent=1 // pred_check
      _
    $region47: #{tpu_custom_call.1} parent=1 // pred_check_branch
      %2972 = sbr.rel (0) target = $region49
    $region48: #{tpu_custom_call.1} parent=1 // pred_region
      %2973 = dma.done [#allocation4], 256
    $region49: #{tpu_custom_call.1} parent=1 // pred_fallthru
      _
    %2974 = vsyncpa [#allocation3], 1
    %2975 = vsyncpa [#allocation6], 1
    %2976 = vsyncpa [#allocation9], 1
    %2977 = vsyncpa [#allocation4], 1

</llo_original>
